<compile_context>
chip_gen: v7x
topology: tpu7x:2x2x1
jax: 0.10.0
libtpu: 0.0.40
codegen_flags: <defaults>
</compile_context>

<pallas_src>
import functools

import jax
import jax.numpy as jnp
from jax import lax
from jax.experimental import pallas as pl
from jax.experimental.pallas import tpu as pltpu


def _cas_resb_kernel(x_ref, w1_ref, wall_ref, slope_ref, mask_ref,
                     o_ref, slab_ref, *, n_blocks, width):
    """Fused CasResB for one batch element.

    x_ref    : (1, C, HW)      input activations, H*W flattened on lanes
    w1_ref   : (nb, C2, C2)    first 1x1 conv weights (Cout, Cin)
    wall_ref : (nb, C, 10*C2)  fused [identity | 9 taps] matrices, rows already
                               interleaved for channel_shuffle(groups=2)
    slope_ref: (C, 1)          per-row LeakyReLU slope (1.0 even, 0.1 odd rows)
    mask_ref : (9, 1, HW)      {0,1} frame-boundary masks for the 3x3 taps
    o_ref    : (1, C, HW)      output; also the resident activation buffer
    slab_ref : (10*C2, HW)     VMEM scratch: RHS slab of the fused matmul
    """
    _, C, HW = x_ref.shape
    C2 = C // 2
    W = width

    slope = slope_ref[...]                               # (C, 1), hoisted

    for b in range(n_blocks):
        # Activation stays resident in VMEM: read x_ref once, then ping the
        # output block (read old / write new) every ResB block.
        src = x_ref if b == 0 else o_ref

        # identity (first) half -> slab rows [0, C2)
        slab_ref[0:C2, :] = src[0, 0:C2, :]

        # ---- 1x1 conv on the second channel half + LeakyReLU(0.1) ----
        y = jnp.dot(w1_ref[b], src[0, C2:C, :],
                    preferred_element_type=jnp.float32)   # (C2, HW)
        y = jnp.maximum(y, 0.1 * y)

        # ---- 3x3 depthwise taps as static lane rotations + boundary masks ----
        for k in range(9):
            dh, dw = k // 3 - 1, k % 3 - 1
            d = dh * W + dw
            if d == 0:
                t = y                                     # center tap: no shift/mask
            else:
                t = pltpu.roll(y, (-d) % HW, 1) * mask_ref[k]
            slab_ref[C2 * (k + 1):C2 * (k + 2), :] = t

        # ---- ONE fused matmul: (dw3x3 * 2nd-1x1) taps + identity + shuffle ----
        z = jnp.dot(wall_ref[b], slab_ref[...],
                    preferred_element_type=jnp.float32)    # (C, HW)
        # LeakyReLU(0.1) on body (odd) rows; identity (even) rows pass through.
        o_ref[0] = jnp.maximum(z, slope * z).astype(o_ref.dtype)


def cas_res_b_forward(x_nchw, params):
    """CasResB forward.  x_nchw: (B, C, H, W) (PyTorch layout) -> (B, C, H, W)."""
    B, C, H, W = x_nchw.shape
    C2 = C // 2
    HW = H * W
    nb = len(params)
    K = 10 * C2
    f32 = jnp.float32

    # ---- pack / pre-fold weights (tiny; done once outside the kernel) ----
    w1s = jnp.stack([p["w1"] for p in params]).astype(f32)                    # (nb, C2, C2)
    w2s = jnp.stack([p["w2"] for p in params]).astype(f32)                    # (nb, C2, C2)
    wdw = jnp.stack([p["wdw"].reshape(C2, 9) for p in params]).astype(f32)    # (nb, C2, 9)

    # Fold depthwise into the 2nd 1x1: w2k[b,k,co,ci] = w2[b,co,ci] * wdw[b,ci,k]
    w2k = w2s[:, None, :, :] * jnp.transpose(wdw, (0, 2, 1))[:, :, None, :]   # (nb,9,C2,C2)

    # One fused (C, K) matrix per block:
    #   columns [0, C2)            : identity half -> even output channels
    #   column  C2 + k*C2 + ci     : tap-k contribution -> odd output channels
    wall = jnp.zeros((nb, C, K), f32)
    wall = wall.at[:, 2 * jnp.arange(C2), jnp.arange(C2)].set(1.0)
    tap_cols = jnp.transpose(w2k, (0, 2, 1, 3)).reshape(nb, C2, 9 * C2)       # [b,co,k*C2+ci]
    wall = wall.at[:, 1::2, C2:].set(tap_cols)

    # Per-output-row LeakyReLU slope: 1.0 on even (identity) rows, 0.1 on odd (body) rows.
    slope = jnp.where(jnp.arange(C)[:, None] % 2 == 1,
                      jnp.float32(0.1), jnp.float32(1.0))                     # (C, 1)

    # Frame-boundary masks for the 9 taps of the flattened (lane) shifts.
    hh = jnp.arange(HW, dtype=jnp.int32) // W
    ww = jnp.arange(HW, dtype=jnp.int32) % W
    mrows = []
    for k in range(9):
        dh, dw = k // 3 - 1, k % 3 - 1
        valid = ((hh + dh >= 0) & (hh + dh < H) & (ww + dw >= 0) & (ww + dw < W))
        mrows.append(valid.astype(f32))
    masks = jnp.stack(mrows)[:, None, :]                                      # (9, 1, HW)

    x3 = x_nchw.reshape(B, C, HW).astype(f32)

    # Scoped-VMEM budget: double-buffered in/out blocks + slab scratch + weights.
    def _rup(v, m):
        return (v + m - 1) // m * m
    hwp = _rup(HW, 128)
    blk_bytes = 4 * C * hwp
    wgt_bytes = 4 * (nb * _rup(C2, 8) * _rup(C2, 128)
                     + nb * C * _rup(K, 128)
                     + _rup(C, 8) * 128
                     + 9 * 8 * hwp)
    est = 2 * 2 * blk_bytes + 4 * K * hwp + 2 * wgt_bytes
    vmem_limit = int(min(64 * 2 ** 20, max(32 * 2 ** 20, 2 * est)))

    kernel = functools.partial(_cas_resb_kernel, n_blocks=nb, width=W)
    out = pl.pallas_call(
        kernel,
        out_shape=jax.ShapeDtypeStruct((B, C, HW), f32),
        grid=(B,),
        in_specs=[
            pl.BlockSpec((1, C, HW), lambda b: (b, 0, 0)),
            pl.BlockSpec((nb, C2, C2), lambda b: (0, 0, 0)),
            pl.BlockSpec((nb, C, K), lambda b: (0, 0, 0)),
            pl.BlockSpec((C, 1), lambda b: (0, 0)),
            pl.BlockSpec((9, 1, HW), lambda b: (0, 0, 0)),
        ],
        out_specs=pl.BlockSpec((1, C, HW), lambda b: (b, 0, 0)),
        scratch_shapes=[pltpu.VMEM((K, HW), jnp.float32)],
        compiler_params=pltpu.CompilerParams(
            dimension_semantics=("parallel",),
            vmem_limit_bytes=vmem_limit),
    )(x3, w1s, wall, slope, masks)
    return out.reshape(B, C, H, W).astype(x_nchw.dtype)


# ----------------------- pure-JAX reference (NCHW, like torch) -----------------------
def _ref_conv1x1(x, w):  # x: (B,Cin,H,W), w: (Cout,Cin)
    return lax.conv_general_dilated(
        x, w[:, :, None, None], (1, 1), "VALID",
        dimension_numbers=("NCHW", "OIHW", "NCHW"))


def _ref_resb(x, w1, wdw, w2):
    C = x.shape[1]
    C2 = C // 2
    first, second = x[:, :C2], x[:, C2:]
    y = _ref_conv1x1(second, w1)
    y = jnp.where(y > 0, y, 0.1 * y)
    y = lax.conv_general_dilated(
        y, wdw, (1, 1), ((1, 1), (1, 1)),
        dimension_numbers=("NCHW", "OIHW", "NCHW"), feature_group_count=C2)
    y = _ref_conv1x1(y, w2)
    y = jnp.where(y > 0, y, 0.1 * y)
    out = jnp.concatenate([first, y], axis=1)
    b, c, h, w = out.shape
    out = out.reshape(b, 2, c // 2, h, w).transpose(0, 2, 1, 3, 4).reshape(b, c, h, w)
    return out


def _ref_cas_res_b(x, params):
    for p in params:
        x = _ref_resb(x, p["w1"], p["wdw"], p["w2"])
    return x


# --------------------------------------- main ---------------------------------------
if __name__ == "__main__":
    B, C, H, W = 2, 32, 16, 16
    n_ResB = 3
    C2 = C // 2

    key = jax.random.PRNGKey(0)
    key, xkey = jax.random.split(key)
    x = jax.random.normal(xkey, (B, C, H, W), dtype=jnp.float32)

    params = []
    for i in range(n_ResB):
        key, k1, k2, k3 = jax.random.split(key, 4)
        params.append({
            "w1": 0.2 * jax.random.normal(k1, (C2, C2), dtype=jnp.float32),        # (Cout,Cin)
            "wdw": 0.2 * jax.random.normal(k2, (C2, 1, 3, 3), dtype=jnp.float32),  # depthwise
            "w2": 0.2 * jax.random.normal(k3, (C2, C2), dtype=jnp.float32),
        })

    out = jax.block_until_ready(cas_res_b_forward(x, params))
    ref = jax.block_until_ready(_ref_cas_res_b(x, params))

    assert out.shape == (B, C, H, W)
    max_err = float(jnp.max(jnp.abs(out - ref)))
    assert max_err < 1e-3, f"mismatch vs reference: {max_err}"
    print("KERNEL_OK")
</pallas_src>

<mosaic_0001>
module attributes {stable_mosaic.version = 11 : i64} {
  func.func @_cas_resb_kernel(%arg0: i32, %arg1: memref<1x32x256xf32, #tpu.memory_space<vmem>>, %arg2: memref<3x16x16xf32, #tpu.memory_space<vmem>>, %arg3: memref<3x32x160xf32, #tpu.memory_space<vmem>>, %arg4: memref<32x1xf32, #tpu.memory_space<vmem>>, %arg5: memref<9x1x256xf32, #tpu.memory_space<vmem>>, %arg6: memref<1x32x256xf32, #tpu.memory_space<vmem>>, %arg7: memref<160x256xf32, #tpu.memory_space<vmem>>) attributes {dimension_semantics = [#tpu.dimension_semantics<parallel>], iteration_bounds = array<i64: 2>, scalar_prefetch = 0 : i64, scratch_operands = 1 : i64, tpu.core_type = #tpu.core_type<tc>, window_params = [{transform_indices = @transform_0, window_bounds = array<i64: 1, 32, 256>}, {pipeline_mode = #tpu.pipeline_mode<synchronous>, transform_indices = @transform_1, window_bounds = array<i64: 3, 16, 16>}, {pipeline_mode = #tpu.pipeline_mode<synchronous>, transform_indices = @transform_2, window_bounds = array<i64: 3, 32, 160>}, {pipeline_mode = #tpu.pipeline_mode<synchronous>, transform_indices = @transform_3, window_bounds = array<i64: 32, 1>}, {pipeline_mode = #tpu.pipeline_mode<synchronous>, transform_indices = @transform_4, window_bounds = array<i64: 9, 1, 256>}, {transform_indices = @transform_5, window_bounds = array<i64: 1, 32, 256>}]} {
    %c0 = arith.constant 0 : index
    %c0_0 = arith.constant 0 : index
    %0 = vector.load %arg4[%c0, %c0_0] : memref<32x1xf32, #tpu.memory_space<vmem>>, vector<32x1xf32>
    %c0_1 = arith.constant 0 : index
    %c0_2 = arith.constant 0 : index
    %c0_3 = arith.constant 0 : index
    %1 = vector.load %arg1[%c0_1, %c0_2, %c0_3] : memref<1x32x256xf32, #tpu.memory_space<vmem>>, vector<1x16x256xf32>
    %2 = vector.shape_cast %1 : vector<1x16x256xf32> to vector<16x256xf32>
    %c0_4 = arith.constant 0 : index
    %c0_5 = arith.constant 0 : index
    %3 = vector.load %arg7[%c0_4, %c0_5] : memref<160x256xf32, #tpu.memory_space<vmem>>, vector<16x256xf32>
    tpu.vector_store %arg7[%c0_4, %c0_5], %2 {strides = array<i32>} : memref<160x256xf32, #tpu.memory_space<vmem>>, vector<16x256xf32>,
    %c0_6 = arith.constant 0 : index
    %c0_7 = arith.constant 0 : index
    %c0_8 = arith.constant 0 : index
    %4 = vector.load %arg2[%c0_6, %c0_7, %c0_8] : memref<3x16x16xf32, #tpu.memory_space<vmem>>, vector<1x16x16xf32>
    %5 = vector.shape_cast %4 : vector<1x16x16xf32> to vector<16x16xf32>
    %c0_9 = arith.constant 0 : index
    %c16 = arith.constant 16 : index
    %c0_10 = arith.constant 0 : index
    %6 = vector.load %arg1[%c0_9, %c16, %c0_10] : memref<1x32x256xf32, #tpu.memory_space<vmem>>, vector<1x16x256xf32>
    %7 = vector.shape_cast %6 : vector<1x16x256xf32> to vector<16x256xf32>
    %cst = arith.constant dense<0.000000e+00> : vector<16x256xf32>
    %8 = tpu.matmul %5, %7, %cst {dimension_numbers = #tpu.dot_dimension_numbers<[1], [0], [0], [1], [0, 0, 1, 1], [], []>} : vector<16x16xf32>, vector<16x256xf32>, vector<16x256xf32> -> vector<16x256xf32>
    %cst_11 = arith.constant 1.000000e-01 : f32
    %9 = vector.broadcast %cst_11 : f32 to vector<16x256xf32>
    %10 = arith.mulf %9, %8 : vector<16x256xf32>
    %11 = arith.maximumf %8, %10 : vector<16x256xf32>
    %c17_i32 = arith.constant 17 : i32
    %12 = tpu.dynamic_rotate %11 by %c17_i32 dim 1 : vector<16x256xf32>, i32 -> vector<16x256xf32>
    %c0_12 = arith.constant 0 : index
    %c0_13 = arith.constant 0 : index
    %c0_14 = arith.constant 0 : index
    %13 = vector.load %arg5[%c0_12, %c0_13, %c0_14] : memref<9x1x256xf32, #tpu.memory_space<vmem>>, vector<1x1x256xf32>
    %14 = vector.shape_cast %13 : vector<1x1x256xf32> to vector<1x256xf32>
    %15 = vector.broadcast %14 : vector<1x256xf32> to vector<16x256xf32>
    %16 = arith.mulf %12, %15 : vector<16x256xf32>
    %c16_15 = arith.constant 16 : index
    %c0_16 = arith.constant 0 : index
    %17 = vector.load %arg7[%c16_15, %c0_16] : memref<160x256xf32, #tpu.memory_space<vmem>>, vector<16x256xf32>
    tpu.vector_store %arg7[%c16_15, %c0_16], %16 {strides = array<i32>} : memref<160x256xf32, #tpu.memory_space<vmem>>, vector<16x256xf32>,
    %c16_i32 = arith.constant 16 : i32
    %18 = tpu.dynamic_rotate %11 by %c16_i32 dim 1 : vector<16x256xf32>, i32 -> vector<16x256xf32>
    %c1 = arith.constant 1 : index
    %c0_17 = arith.constant 0 : index
    %c0_18 = arith.constant 0 : index
    %19 = vector.load %arg5[%c1, %c0_17, %c0_18] : memref<9x1x256xf32, #tpu.memory_space<vmem>>, vector<1x1x256xf32>
    %20 = vector.shape_cast %19 : vector<1x1x256xf32> to vector<1x256xf32>
    %21 = vector.broadcast %20 : vector<1x256xf32> to vector<16x256xf32>
    %22 = arith.mulf %18, %21 : vector<16x256xf32>
    %c32 = arith.constant 32 : index
    %c0_19 = arith.constant 0 : index
    %23 = vector.load %arg7[%c32, %c0_19] : memref<160x256xf32, #tpu.memory_space<vmem>>, vector<16x256xf32>
    tpu.vector_store %arg7[%c32, %c0_19], %22 {strides = array<i32>} : memref<160x256xf32, #tpu.memory_space<vmem>>, vector<16x256xf32>,
    %c15_i32 = arith.constant 15 : i32
    %24 = tpu.dynamic_rotate %11 by %c15_i32 dim 1 : vector<16x256xf32>, i32 -> vector<16x256xf32>
    %c2 = arith.constant 2 : index
    %c0_20 = arith.constant 0 : index
    %c0_21 = arith.constant 0 : index
    %25 = vector.load %arg5[%c2, %c0_20, %c0_21] : memref<9x1x256xf32, #tpu.memory_space<vmem>>, vector<1x1x256xf32>
    %26 = vector.shape_cast %25 : vector<1x1x256xf32> to vector<1x256xf32>
    %27 = vector.broadcast %26 : vector<1x256xf32> to vector<16x256xf32>
    %28 = arith.mulf %24, %27 : vector<16x256xf32>
    %c48 = arith.constant 48 : index
    %c0_22 = arith.constant 0 : index
    %29 = vector.load %arg7[%c48, %c0_22] : memref<160x256xf32, #tpu.memory_space<vmem>>, vector<16x256xf32>
    tpu.vector_store %arg7[%c48, %c0_22], %28 {strides = array<i32>} : memref<160x256xf32, #tpu.memory_space<vmem>>, vector<16x256xf32>,
    %c1_i32 = arith.constant 1 : i32
    %30 = tpu.dynamic_rotate %11 by %c1_i32 dim 1 : vector<16x256xf32>, i32 -> vector<16x256xf32>
    %c3 = arith.constant 3 : index
    %c0_23 = arith.constant 0 : index
    %c0_24 = arith.constant 0 : index
    %31 = vector.load %arg5[%c3, %c0_23, %c0_24] : memref<9x1x256xf32, #tpu.memory_space<vmem>>, vector<1x1x256xf32>
    %32 = vector.shape_cast %31 : vector<1x1x256xf32> to vector<1x256xf32>
    %33 = vector.broadcast %32 : vector<1x256xf32> to vector<16x256xf32>
    %34 = arith.mulf %30, %33 : vector<16x256xf32>
    %c64 = arith.constant 64 : index
    %c0_25 = arith.constant 0 : index
    %35 = vector.load %arg7[%c64, %c0_25] : memref<160x256xf32, #tpu.memory_space<vmem>>, vector<16x256xf32>
    tpu.vector_store %arg7[%c64, %c0_25], %34 {strides = array<i32>} : memref<160x256xf32, #tpu.memory_space<vmem>>, vector<16x256xf32>,
    %c80 = arith.constant 80 : index
    %c0_26 = arith.constant 0 : index
    %36 = vector.load %arg7[%c80, %c0_26] : memref<160x256xf32, #tpu.memory_space<vmem>>, vector<16x256xf32>
    tpu.vector_store %arg7[%c80, %c0_26], %11 {strides = array<i32>} : memref<160x256xf32, #tpu.memory_space<vmem>>, vector<16x256xf32>,
    %c255_i32 = arith.constant 255 : i32
    %37 = tpu.dynamic_rotate %11 by %c255_i32 dim 1 : vector<16x256xf32>, i32 -> vector<16x256xf32>
    %c5 = arith.constant 5 : index
    %c0_27 = arith.constant 0 : index
    %c0_28 = arith.constant 0 : index
    %38 = vector.load %arg5[%c5, %c0_27, %c0_28] : memref<9x1x256xf32, #tpu.memory_space<vmem>>, vector<1x1x256xf32>
    %39 = vector.shape_cast %38 : vector<1x1x256xf32> to vector<1x256xf32>
    %40 = vector.broadcast %39 : vector<1x256xf32> to vector<16x256xf32>
    %41 = arith.mulf %37, %40 : vector<16x256xf32>
    %c96 = arith.constant 96 : index
    %c0_29 = arith.constant 0 : index
    %42 = vector.load %arg7[%c96, %c0_29] : memref<160x256xf32, #tpu.memory_space<vmem>>, vector<16x256xf32>
    tpu.vector_store %arg7[%c96, %c0_29], %41 {strides = array<i32>} : memref<160x256xf32, #tpu.memory_space<vmem>>, vector<16x256xf32>,
    %c241_i32 = arith.constant 241 : i32
    %43 = tpu.dynamic_rotate %11 by %c241_i32 dim 1 : vector<16x256xf32>, i32 -> vector<16x256xf32>
    %c6 = arith.constant 6 : index
    %c0_30 = arith.constant 0 : index
    %c0_31 = arith.constant 0 : index
    %44 = vector.load %arg5[%c6, %c0_30, %c0_31] : memref<9x1x256xf32, #tpu.memory_space<vmem>>, vector<1x1x256xf32>
    %45 = vector.shape_cast %44 : vector<1x1x256xf32> to vector<1x256xf32>
    %46 = vector.broadcast %45 : vector<1x256xf32> to vector<16x256xf32>
    %47 = arith.mulf %43, %46 : vector<16x256xf32>
    %c112 = arith.constant 112 : index
    %c0_32 = arith.constant 0 : index
    %48 = vector.load %arg7[%c112, %c0_32] : memref<160x256xf32, #tpu.memory_space<vmem>>, vector<16x256xf32>
    tpu.vector_store %arg7[%c112, %c0_32], %47 {strides = array<i32>} : memref<160x256xf32, #tpu.memory_space<vmem>>, vector<16x256xf32>,
    %c240_i32 = arith.constant 240 : i32
    %49 = tpu.dynamic_rotate %11 by %c240_i32 dim 1 : vector<16x256xf32>, i32 -> vector<16x256xf32>
    %c7 = arith.constant 7 : index
    %c0_33 = arith.constant 0 : index
    %c0_34 = arith.constant 0 : index
    %50 = vector.load %arg5[%c7, %c0_33, %c0_34] : memref<9x1x256xf32, #tpu.memory_space<vmem>>, vector<1x1x256xf32>
    %51 = vector.shape_cast %50 : vector<1x1x256xf32> to vector<1x256xf32>
    %52 = vector.broadcast %51 : vector<1x256xf32> to vector<16x256xf32>
    %53 = arith.mulf %49, %52 : vector<16x256xf32>
    %c128 = arith.constant 128 : index
    %c0_35 = arith.constant 0 : index
    %54 = vector.load %arg7[%c128, %c0_35] : memref<160x256xf32, #tpu.memory_space<vmem>>, vector<16x256xf32>
    tpu.vector_store %arg7[%c128, %c0_35], %53 {strides = array<i32>} : memref<160x256xf32, #tpu.memory_space<vmem>>, vector<16x256xf32>,
    %c239_i32 = arith.constant 239 : i32
    %55 = tpu.dynamic_rotate %11 by %c239_i32 dim 1 : vector<16x256xf32>, i32 -> vector<16x256xf32>
    %c8 = arith.constant 8 : index
    %c0_36 = arith.constant 0 : index
    %c0_37 = arith.constant 0 : index
    %56 = vector.load %arg5[%c8, %c0_36, %c0_37] : memref<9x1x256xf32, #tpu.memory_space<vmem>>, vector<1x1x256xf32>
    %57 = vector.shape_cast %56 : vector<1x1x256xf32> to vector<1x256xf32>
    %58 = vector.broadcast %57 : vector<1x256xf32> to vector<16x256xf32>
    %59 = arith.mulf %55, %58 : vector<16x256xf32>
    %c144 = arith.constant 144 : index
    %c0_38 = arith.constant 0 : index
    %60 = vector.load %arg7[%c144, %c0_38] : memref<160x256xf32, #tpu.memory_space<vmem>>, vector<16x256xf32>
    tpu.vector_store %arg7[%c144, %c0_38], %59 {strides = array<i32>} : memref<160x256xf32, #tpu.memory_space<vmem>>, vector<16x256xf32>,
    %c0_39 = arith.constant 0 : index
    %c0_40 = arith.constant 0 : index
    %c0_41 = arith.constant 0 : index
    %61 = vector.load %arg3[%c0_39, %c0_40, %c0_41] : memref<3x32x160xf32, #tpu.memory_space<vmem>>, vector<1x32x160xf32>
    %62 = vector.shape_cast %61 : vector<1x32x160xf32> to vector<32x160xf32>
    %c0_42 = arith.constant 0 : index
    %c0_43 = arith.constant 0 : index
    %63 = vector.load %arg7[%c0_42, %c0_43] : memref<160x256xf32, #tpu.memory_space<vmem>>, vector<160x256xf32>
    %cst_44 = arith.constant dense<0.000000e+00> : vector<32x256xf32>
    %64 = tpu.matmul %62, %63, %cst_44 {dimension_numbers = #tpu.dot_dimension_numbers<[1], [0], [0], [1], [0, 0, 1, 1], [], []>} : vector<32x160xf32>, vector<160x256xf32>, vector<32x256xf32> -> vector<32x256xf32>
    %65 = vector.broadcast %0 : vector<32x1xf32> to vector<32x256xf32>
    %66 = arith.mulf %65, %64 : vector<32x256xf32>
    %67 = arith.maximumf %64, %66 : vector<32x256xf32>
    %c0_45 = arith.constant 0 : index
    %c0_46 = arith.constant 0 : index
    %c0_47 = arith.constant 0 : index
    %68 = vector.load %arg6[%c0_45, %c0_46, %c0_47] : memref<1x32x256xf32, #tpu.memory_space<vmem>>, vector<1x32x256xf32>
    %69 = vector.shape_cast %68 : vector<1x32x256xf32> to vector<32x256xf32>
    %70 = vector.shape_cast %67 : vector<32x256xf32> to vector<1x32x256xf32>
    tpu.vector_store %arg6[%c0_45, %c0_46, %c0_47], %70 {strides = array<i32>} : memref<1x32x256xf32, #tpu.memory_space<vmem>>, vector<1x32x256xf32>,
    %c0_48 = arith.constant 0 : index
    %c0_49 = arith.constant 0 : index
    %c0_50 = arith.constant 0 : index
    %71 = vector.load %arg6[%c0_48, %c0_49, %c0_50] : memref<1x32x256xf32, #tpu.memory_space<vmem>>, vector<1x16x256xf32>
    %72 = vector.shape_cast %71 : vector<1x16x256xf32> to vector<16x256xf32>
    %c0_51 = arith.constant 0 : index
    %c0_52 = arith.constant 0 : index
    %73 = vector.load %arg7[%c0_51, %c0_52] : memref<160x256xf32, #tpu.memory_space<vmem>>, vector<16x256xf32>
    tpu.vector_store %arg7[%c0_51, %c0_52], %72 {strides = array<i32>} : memref<160x256xf32, #tpu.memory_space<vmem>>, vector<16x256xf32>,
    %c1_53 = arith.constant 1 : index
    %c0_54 = arith.constant 0 : index
    %c0_55 = arith.constant 0 : index
    %74 = vector.load %arg2[%c1_53, %c0_54, %c0_55] : memref<3x16x16xf32, #tpu.memory_space<vmem>>, vector<1x16x16xf32>
    %75 = vector.shape_cast %74 : vector<1x16x16xf32> to vector<16x16xf32>
    %c0_56 = arith.constant 0 : index
    %c16_57 = arith.constant 16 : index
    %c0_58 = arith.constant 0 : index
    %76 = vector.load %arg6[%c0_56, %c16_57, %c0_58] : memref<1x32x256xf32, #tpu.memory_space<vmem>>, vector<1x16x256xf32>
    %77 = vector.shape_cast %76 : vector<1x16x256xf32> to vector<16x256xf32>
    %cst_59 = arith.constant dense<0.000000e+00> : vector<16x256xf32>
    %78 = tpu.matmul %75, %77, %cst_59 {dimension_numbers = #tpu.dot_dimension_numbers<[1], [0], [0], [1], [0, 0, 1, 1], [], []>} : vector<16x16xf32>, vector<16x256xf32>, vector<16x256xf32> -> vector<16x256xf32>
    %cst_60 = arith.constant 1.000000e-01 : f32
    %79 = vector.broadcast %cst_60 : f32 to vector<16x256xf32>
    %80 = arith.mulf %79, %78 : vector<16x256xf32>
    %81 = arith.maximumf %78, %80 : vector<16x256xf32>
    %c17_i32_61 = arith.constant 17 : i32
    %82 = tpu.dynamic_rotate %81 by %c17_i32_61 dim 1 : vector<16x256xf32>, i32 -> vector<16x256xf32>
    %c0_62 = arith.constant 0 : index
    %c0_63 = arith.constant 0 : index
    %c0_64 = arith.constant 0 : index
    %83 = vector.load %arg5[%c0_62, %c0_63, %c0_64] : memref<9x1x256xf32, #tpu.memory_space<vmem>>, vector<1x1x256xf32>
    %84 = vector.shape_cast %83 : vector<1x1x256xf32> to vector<1x256xf32>
    %85 = vector.broadcast %84 : vector<1x256xf32> to vector<16x256xf32>
    %86 = arith.mulf %82, %85 : vector<16x256xf32>
    %c16_65 = arith.constant 16 : index
    %c0_66 = arith.constant 0 : index
    %87 = vector.load %arg7[%c16_65, %c0_66] : memref<160x256xf32, #tpu.memory_space<vmem>>, vector<16x256xf32>
    tpu.vector_store %arg7[%c16_65, %c0_66], %86 {strides = array<i32>} : memref<160x256xf32, #tpu.memory_space<vmem>>, vector<16x256xf32>,
    %c16_i32_67 = arith.constant 16 : i32
    %88 = tpu.dynamic_rotate %81 by %c16_i32_67 dim 1 : vector<16x256xf32>, i32 -> vector<16x256xf32>
    %c1_68 = arith.constant 1 : index
    %c0_69 = arith.constant 0 : index
    %c0_70 = arith.constant 0 : index
    %89 = vector.load %arg5[%c1_68, %c0_69, %c0_70] : memref<9x1x256xf32, #tpu.memory_space<vmem>>, vector<1x1x256xf32>
    %90 = vector.shape_cast %89 : vector<1x1x256xf32> to vector<1x256xf32>
    %91 = vector.broadcast %90 : vector<1x256xf32> to vector<16x256xf32>
    %92 = arith.mulf %88, %91 : vector<16x256xf32>
    %c32_71 = arith.constant 32 : index
    %c0_72 = arith.constant 0 : index
    %93 = vector.load %arg7[%c32_71, %c0_72] : memref<160x256xf32, #tpu.memory_space<vmem>>, vector<16x256xf32>
    tpu.vector_store %arg7[%c32_71, %c0_72], %92 {strides = array<i32>} : memref<160x256xf32, #tpu.memory_space<vmem>>, vector<16x256xf32>,
    %c15_i32_73 = arith.constant 15 : i32
    %94 = tpu.dynamic_rotate %81 by %c15_i32_73 dim 1 : vector<16x256xf32>, i32 -> vector<16x256xf32>
    %c2_74 = arith.constant 2 : index
    %c0_75 = arith.constant 0 : index
    %c0_76 = arith.constant 0 : index
    %95 = vector.load %arg5[%c2_74, %c0_75, %c0_76] : memref<9x1x256xf32, #tpu.memory_space<vmem>>, vector<1x1x256xf32>
    %96 = vector.shape_cast %95 : vector<1x1x256xf32> to vector<1x256xf32>
    %97 = vector.broadcast %96 : vector<1x256xf32> to vector<16x256xf32>
    %98 = arith.mulf %94, %97 : vector<16x256xf32>
    %c48_77 = arith.constant 48 : index
    %c0_78 = arith.constant 0 : index
    %99 = vector.load %arg7[%c48_77, %c0_78] : memref<160x256xf32, #tpu.memory_space<vmem>>, vector<16x256xf32>
    tpu.vector_store %arg7[%c48_77, %c0_78], %98 {strides = array<i32>} : memref<160x256xf32, #tpu.memory_space<vmem>>, vector<16x256xf32>,
    %c1_i32_79 = arith.constant 1 : i32
    %100 = tpu.dynamic_rotate %81 by %c1_i32_79 dim 1 : vector<16x256xf32>, i32 -> vector<16x256xf32>
    %c3_80 = arith.constant 3 : index
    %c0_81 = arith.constant 0 : index
    %c0_82 = arith.constant 0 : index
    %101 = vector.load %arg5[%c3_80, %c0_81, %c0_82] : memref<9x1x256xf32, #tpu.memory_space<vmem>>, vector<1x1x256xf32>
    %102 = vector.shape_cast %101 : vector<1x1x256xf32> to vector<1x256xf32>
    %103 = vector.broadcast %102 : vector<1x256xf32> to vector<16x256xf32>
    %104 = arith.mulf %100, %103 : vector<16x256xf32>
    %c64_83 = arith.constant 64 : index
    %c0_84 = arith.constant 0 : index
    %105 = vector.load %arg7[%c64_83, %c0_84] : memref<160x256xf32, #tpu.memory_space<vmem>>, vector<16x256xf32>
    tpu.vector_store %arg7[%c64_83, %c0_84], %104 {strides = array<i32>} : memref<160x256xf32, #tpu.memory_space<vmem>>, vector<16x256xf32>,
    %c80_85 = arith.constant 80 : index
    %c0_86 = arith.constant 0 : index
    %106 = vector.load %arg7[%c80_85, %c0_86] : memref<160x256xf32, #tpu.memory_space<vmem>>, vector<16x256xf32>
    tpu.vector_store %arg7[%c80_85, %c0_86], %81 {strides = array<i32>} : memref<160x256xf32, #tpu.memory_space<vmem>>, vector<16x256xf32>,
    %c255_i32_87 = arith.constant 255 : i32
    %107 = tpu.dynamic_rotate %81 by %c255_i32_87 dim 1 : vector<16x256xf32>, i32 -> vector<16x256xf32>
    %c5_88 = arith.constant 5 : index
    %c0_89 = arith.constant 0 : index
    %c0_90 = arith.constant 0 : index
    %108 = vector.load %arg5[%c5_88, %c0_89, %c0_90] : memref<9x1x256xf32, #tpu.memory_space<vmem>>, vector<1x1x256xf32>
    %109 = vector.shape_cast %108 : vector<1x1x256xf32> to vector<1x256xf32>
    %110 = vector.broadcast %109 : vector<1x256xf32> to vector<16x256xf32>
    %111 = arith.mulf %107, %110 : vector<16x256xf32>
    %c96_91 = arith.constant 96 : index
    %c0_92 = arith.constant 0 : index
    %112 = vector.load %arg7[%c96_91, %c0_92] : memref<160x256xf32, #tpu.memory_space<vmem>>, vector<16x256xf32>
    tpu.vector_store %arg7[%c96_91, %c0_92], %111 {strides = array<i32>} : memref<160x256xf32, #tpu.memory_space<vmem>>, vector<16x256xf32>,
    %c241_i32_93 = arith.constant 241 : i32
    %113 = tpu.dynamic_rotate %81 by %c241_i32_93 dim 1 : vector<16x256xf32>, i32 -> vector<16x256xf32>
    %c6_94 = arith.constant 6 : index
    %c0_95 = arith.constant 0 : index
    %c0_96 = arith.constant 0 : index
    %114 = vector.load %arg5[%c6_94, %c0_95, %c0_96] : memref<9x1x256xf32, #tpu.memory_space<vmem>>, vector<1x1x256xf32>
    %115 = vector.shape_cast %114 : vector<1x1x256xf32> to vector<1x256xf32>
    %116 = vector.broadcast %115 : vector<1x256xf32> to vector<16x256xf32>
    %117 = arith.mulf %113, %116 : vector<16x256xf32>
    %c112_97 = arith.constant 112 : index
    %c0_98 = arith.constant 0 : index
    %118 = vector.load %arg7[%c112_97, %c0_98] : memref<160x256xf32, #tpu.memory_space<vmem>>, vector<16x256xf32>
    tpu.vector_store %arg7[%c112_97, %c0_98], %117 {strides = array<i32>} : memref<160x256xf32, #tpu.memory_space<vmem>>, vector<16x256xf32>,
    %c240_i32_99 = arith.constant 240 : i32
    %119 = tpu.dynamic_rotate %81 by %c240_i32_99 dim 1 : vector<16x256xf32>, i32 -> vector<16x256xf32>
    %c7_100 = arith.constant 7 : index
    %c0_101 = arith.constant 0 : index
    %c0_102 = arith.constant 0 : index
    %120 = vector.load %arg5[%c7_100, %c0_101, %c0_102] : memref<9x1x256xf32, #tpu.memory_space<vmem>>, vector<1x1x256xf32>
    %121 = vector.shape_cast %120 : vector<1x1x256xf32> to vector<1x256xf32>
    %122 = vector.broadcast %121 : vector<1x256xf32> to vector<16x256xf32>
    %123 = arith.mulf %119, %122 : vector<16x256xf32>
    %c128_103 = arith.constant 128 : index
    %c0_104 = arith.constant 0 : index
    %124 = vector.load %arg7[%c128_103, %c0_104] : memref<160x256xf32, #tpu.memory_space<vmem>>, vector<16x256xf32>
    tpu.vector_store %arg7[%c128_103, %c0_104], %123 {strides = array<i32>} : memref<160x256xf32, #tpu.memory_space<vmem>>, vector<16x256xf32>,
    %c239_i32_105 = arith.constant 239 : i32
    %125 = tpu.dynamic_rotate %81 by %c239_i32_105 dim 1 : vector<16x256xf32>, i32 -> vector<16x256xf32>
    %c8_106 = arith.constant 8 : index
    %c0_107 = arith.constant 0 : index
    %c0_108 = arith.constant 0 : index
    %126 = vector.load %arg5[%c8_106, %c0_107, %c0_108] : memref<9x1x256xf32, #tpu.memory_space<vmem>>, vector<1x1x256xf32>
    %127 = vector.shape_cast %126 : vector<1x1x256xf32> to vector<1x256xf32>
    %128 = vector.broadcast %127 : vector<1x256xf32> to vector<16x256xf32>
    %129 = arith.mulf %125, %128 : vector<16x256xf32>
    %c144_109 = arith.constant 144 : index
    %c0_110 = arith.constant 0 : index
    %130 = vector.load %arg7[%c144_109, %c0_110] : memref<160x256xf32, #tpu.memory_space<vmem>>, vector<16x256xf32>
    tpu.vector_store %arg7[%c144_109, %c0_110], %129 {strides = array<i32>} : memref<160x256xf32, #tpu.memory_space<vmem>>, vector<16x256xf32>,
    %c1_111 = arith.constant 1 : index
    %c0_112 = arith.constant 0 : index
    %c0_113 = arith.constant 0 : index
    %131 = vector.load %arg3[%c1_111, %c0_112, %c0_113] : memref<3x32x160xf32, #tpu.memory_space<vmem>>, vector<1x32x160xf32>
    %132 = vector.shape_cast %131 : vector<1x32x160xf32> to vector<32x160xf32>
    %c0_114 = arith.constant 0 : index
    %c0_115 = arith.constant 0 : index
    %133 = vector.load %arg7[%c0_114, %c0_115] : memref<160x256xf32, #tpu.memory_space<vmem>>, vector<160x256xf32>
    %cst_116 = arith.constant dense<0.000000e+00> : vector<32x256xf32>
    %134 = tpu.matmul %132, %133, %cst_116 {dimension_numbers = #tpu.dot_dimension_numbers<[1], [0], [0], [1], [0, 0, 1, 1], [], []>} : vector<32x160xf32>, vector<160x256xf32>, vector<32x256xf32> -> vector<32x256xf32>
    %135 = vector.broadcast %0 : vector<32x1xf32> to vector<32x256xf32>
    %136 = arith.mulf %135, %134 : vector<32x256xf32>
    %137 = arith.maximumf %134, %136 : vector<32x256xf32>
    %c0_117 = arith.constant 0 : index
    %c0_118 = arith.constant 0 : index
    %c0_119 = arith.constant 0 : index
    %138 = vector.load %arg6[%c0_117, %c0_118, %c0_119] : memref<1x32x256xf32, #tpu.memory_space<vmem>>, vector<1x32x256xf32>
    %139 = vector.shape_cast %138 : vector<1x32x256xf32> to vector<32x256xf32>
    %140 = vector.shape_cast %137 : vector<32x256xf32> to vector<1x32x256xf32>
    tpu.vector_store %arg6[%c0_117, %c0_118, %c0_119], %140 {strides = array<i32>} : memref<1x32x256xf32, #tpu.memory_space<vmem>>, vector<1x32x256xf32>,
    %c0_120 = arith.constant 0 : index
    %c0_121 = arith.constant 0 : index
    %c0_122 = arith.constant 0 : index
    %141 = vector.load %arg6[%c0_120, %c0_121, %c0_122] : memref<1x32x256xf32, #tpu.memory_space<vmem>>, vector<1x16x256xf32>
    %142 = vector.shape_cast %141 : vector<1x16x256xf32> to vector<16x256xf32>
    %c0_123 = arith.constant 0 : index
    %c0_124 = arith.constant 0 : index
    %143 = vector.load %arg7[%c0_123, %c0_124] : memref<160x256xf32, #tpu.memory_space<vmem>>, vector<16x256xf32>
    tpu.vector_store %arg7[%c0_123, %c0_124], %142 {strides = array<i32>} : memref<160x256xf32, #tpu.memory_space<vmem>>, vector<16x256xf32>,
    %c2_125 = arith.constant 2 : index
    %c0_126 = arith.constant 0 : index
    %c0_127 = arith.constant 0 : index
    %144 = vector.load %arg2[%c2_125, %c0_126, %c0_127] : memref<3x16x16xf32, #tpu.memory_space<vmem>>, vector<1x16x16xf32>
    %145 = vector.shape_cast %144 : vector<1x16x16xf32> to vector<16x16xf32>
    %c0_128 = arith.constant 0 : index
    %c16_129 = arith.constant 16 : index
    %c0_130 = arith.constant 0 : index
    %146 = vector.load %arg6[%c0_128, %c16_129, %c0_130] : memref<1x32x256xf32, #tpu.memory_space<vmem>>, vector<1x16x256xf32>
    %147 = vector.shape_cast %146 : vector<1x16x256xf32> to vector<16x256xf32>
    %cst_131 = arith.constant dense<0.000000e+00> : vector<16x256xf32>
    %148 = tpu.matmul %145, %147, %cst_131 {dimension_numbers = #tpu.dot_dimension_numbers<[1], [0], [0], [1], [0, 0, 1, 1], [], []>} : vector<16x16xf32>, vector<16x256xf32>, vector<16x256xf32> -> vector<16x256xf32>
    %cst_132 = arith.constant 1.000000e-01 : f32
    %149 = vector.broadcast %cst_132 : f32 to vector<16x256xf32>
    %150 = arith.mulf %149, %148 : vector<16x256xf32>
    %151 = arith.maximumf %148, %150 : vector<16x256xf32>
    %c17_i32_133 = arith.constant 17 : i32
    %152 = tpu.dynamic_rotate %151 by %c17_i32_133 dim 1 : vector<16x256xf32>, i32 -> vector<16x256xf32>
    %c0_134 = arith.constant 0 : index
    %c0_135 = arith.constant 0 : index
    %c0_136 = arith.constant 0 : index
    %153 = vector.load %arg5[%c0_134, %c0_135, %c0_136] : memref<9x1x256xf32, #tpu.memory_space<vmem>>, vector<1x1x256xf32>
    %154 = vector.shape_cast %153 : vector<1x1x256xf32> to vector<1x256xf32>
    %155 = vector.broadcast %154 : vector<1x256xf32> to vector<16x256xf32>
    %156 = arith.mulf %152, %155 : vector<16x256xf32>
    %c16_137 = arith.constant 16 : index
    %c0_138 = arith.constant 0 : index
    %157 = vector.load %arg7[%c16_137, %c0_138] : memref<160x256xf32, #tpu.memory_space<vmem>>, vector<16x256xf32>
    tpu.vector_store %arg7[%c16_137, %c0_138], %156 {strides = array<i32>} : memref<160x256xf32, #tpu.memory_space<vmem>>, vector<16x256xf32>,
    %c16_i32_139 = arith.constant 16 : i32
    %158 = tpu.dynamic_rotate %151 by %c16_i32_139 dim 1 : vector<16x256xf32>, i32 -> vector<16x256xf32>
    %c1_140 = arith.constant 1 : index
    %c0_141 = arith.constant 0 : index
    %c0_142 = arith.constant 0 : index
    %159 = vector.load %arg5[%c1_140, %c0_141, %c0_142] : memref<9x1x256xf32, #tpu.memory_space<vmem>>, vector<1x1x256xf32>
    %160 = vector.shape_cast %159 : vector<1x1x256xf32> to vector<1x256xf32>
    %161 = vector.broadcast %160 : vector<1x256xf32> to vector<16x256xf32>
    %162 = arith.mulf %158, %161 : vector<16x256xf32>
    %c32_143 = arith.constant 32 : index
    %c0_144 = arith.constant 0 : index
    %163 = vector.load %arg7[%c32_143, %c0_144] : memref<160x256xf32, #tpu.memory_space<vmem>>, vector<16x256xf32>
    tpu.vector_store %arg7[%c32_143, %c0_144], %162 {strides = array<i32>} : memref<160x256xf32, #tpu.memory_space<vmem>>, vector<16x256xf32>,
    %c15_i32_145 = arith.constant 15 : i32
    %164 = tpu.dynamic_rotate %151 by %c15_i32_145 dim 1 : vector<16x256xf32>, i32 -> vector<16x256xf32>
    %c2_146 = arith.constant 2 : index
    %c0_147 = arith.constant 0 : index
    %c0_148 = arith.constant 0 : index
    %165 = vector.load %arg5[%c2_146, %c0_147, %c0_148] : memref<9x1x256xf32, #tpu.memory_space<vmem>>, vector<1x1x256xf32>
    %166 = vector.shape_cast %165 : vector<1x1x256xf32> to vector<1x256xf32>
    %167 = vector.broadcast %166 : vector<1x256xf32> to vector<16x256xf32>
    %168 = arith.mulf %164, %167 : vector<16x256xf32>
    %c48_149 = arith.constant 48 : index
    %c0_150 = arith.constant 0 : index
    %169 = vector.load %arg7[%c48_149, %c0_150] : memref<160x256xf32, #tpu.memory_space<vmem>>, vector<16x256xf32>
    tpu.vector_store %arg7[%c48_149, %c0_150], %168 {strides = array<i32>} : memref<160x256xf32, #tpu.memory_space<vmem>>, vector<16x256xf32>,
    %c1_i32_151 = arith.constant 1 : i32
    %170 = tpu.dynamic_rotate %151 by %c1_i32_151 dim 1 : vector<16x256xf32>, i32 -> vector<16x256xf32>
    %c3_152 = arith.constant 3 : index
    %c0_153 = arith.constant 0 : index
    %c0_154 = arith.constant 0 : index
    %171 = vector.load %arg5[%c3_152, %c0_153, %c0_154] : memref<9x1x256xf32, #tpu.memory_space<vmem>>, vector<1x1x256xf32>
    %172 = vector.shape_cast %171 : vector<1x1x256xf32> to vector<1x256xf32>
    %173 = vector.broadcast %172 : vector<1x256xf32> to vector<16x256xf32>
    %174 = arith.mulf %170, %173 : vector<16x256xf32>
    %c64_155 = arith.constant 64 : index
    %c0_156 = arith.constant 0 : index
    %175 = vector.load %arg7[%c64_155, %c0_156] : memref<160x256xf32, #tpu.memory_space<vmem>>, vector<16x256xf32>
    tpu.vector_store %arg7[%c64_155, %c0_156], %174 {strides = array<i32>} : memref<160x256xf32, #tpu.memory_space<vmem>>, vector<16x256xf32>,
    %c80_157 = arith.constant 80 : index
    %c0_158 = arith.constant 0 : index
    %176 = vector.load %arg7[%c80_157, %c0_158] : memref<160x256xf32, #tpu.memory_space<vmem>>, vector<16x256xf32>
    tpu.vector_store %arg7[%c80_157, %c0_158], %151 {strides = array<i32>} : memref<160x256xf32, #tpu.memory_space<vmem>>, vector<16x256xf32>,
    %c255_i32_159 = arith.constant 255 : i32
    %177 = tpu.dynamic_rotate %151 by %c255_i32_159 dim 1 : vector<16x256xf32>, i32 -> vector<16x256xf32>
    %c5_160 = arith.constant 5 : index
    %c0_161 = arith.constant 0 : index
    %c0_162 = arith.constant 0 : index
    %178 = vector.load %arg5[%c5_160, %c0_161, %c0_162] : memref<9x1x256xf32, #tpu.memory_space<vmem>>, vector<1x1x256xf32>
    %179 = vector.shape_cast %178 : vector<1x1x256xf32> to vector<1x256xf32>
    %180 = vector.broadcast %179 : vector<1x256xf32> to vector<16x256xf32>
    %181 = arith.mulf %177, %180 : vector<16x256xf32>
    %c96_163 = arith.constant 96 : index
    %c0_164 = arith.constant 0 : index
    %182 = vector.load %arg7[%c96_163, %c0_164] : memref<160x256xf32, #tpu.memory_space<vmem>>, vector<16x256xf32>
    tpu.vector_store %arg7[%c96_163, %c0_164], %181 {strides = array<i32>} : memref<160x256xf32, #tpu.memory_space<vmem>>, vector<16x256xf32>,
    %c241_i32_165 = arith.constant 241 : i32
    %183 = tpu.dynamic_rotate %151 by %c241_i32_165 dim 1 : vector<16x256xf32>, i32 -> vector<16x256xf32>
    %c6_166 = arith.constant 6 : index
    %c0_167 = arith.constant 0 : index
    %c0_168 = arith.constant 0 : index
    %184 = vector.load %arg5[%c6_166, %c0_167, %c0_168] : memref<9x1x256xf32, #tpu.memory_space<vmem>>, vector<1x1x256xf32>
    %185 = vector.shape_cast %184 : vector<1x1x256xf32> to vector<1x256xf32>
    %186 = vector.broadcast %185 : vector<1x256xf32> to vector<16x256xf32>
    %187 = arith.mulf %183, %186 : vector<16x256xf32>
    %c112_169 = arith.constant 112 : index
    %c0_170 = arith.constant 0 : index
    %188 = vector.load %arg7[%c112_169, %c0_170] : memref<160x256xf32, #tpu.memory_space<vmem>>, vector<16x256xf32>
    tpu.vector_store %arg7[%c112_169, %c0_170], %187 {strides = array<i32>} : memref<160x256xf32, #tpu.memory_space<vmem>>, vector<16x256xf32>,
    %c240_i32_171 = arith.constant 240 : i32
    %189 = tpu.dynamic_rotate %151 by %c240_i32_171 dim 1 : vector<16x256xf32>, i32 -> vector<16x256xf32>
    %c7_172 = arith.constant 7 : index
    %c0_173 = arith.constant 0 : index
    %c0_174 = arith.constant 0 : index
    %190 = vector.load %arg5[%c7_172, %c0_173, %c0_174] : memref<9x1x256xf32, #tpu.memory_space<vmem>>, vector<1x1x256xf32>
    %191 = vector.shape_cast %190 : vector<1x1x256xf32> to vector<1x256xf32>
    %192 = vector.broadcast %191 : vector<1x256xf32> to vector<16x256xf32>
    %193 = arith.mulf %189, %192 : vector<16x256xf32>
    %c128_175 = arith.constant 128 : index
    %c0_176 = arith.constant 0 : index
    %194 = vector.load %arg7[%c128_175, %c0_176] : memref<160x256xf32, #tpu.memory_space<vmem>>, vector<16x256xf32>
    tpu.vector_store %arg7[%c128_175, %c0_176], %193 {strides = array<i32>} : memref<160x256xf32, #tpu.memory_space<vmem>>, vector<16x256xf32>,
    %c239_i32_177 = arith.constant 239 : i32
    %195 = tpu.dynamic_rotate %151 by %c239_i32_177 dim 1 : vector<16x256xf32>, i32 -> vector<16x256xf32>
    %c8_178 = arith.constant 8 : index
    %c0_179 = arith.constant 0 : index
    %c0_180 = arith.constant 0 : index
    %196 = vector.load %arg5[%c8_178, %c0_179, %c0_180] : memref<9x1x256xf32, #tpu.memory_space<vmem>>, vector<1x1x256xf32>
    %197 = vector.shape_cast %196 : vector<1x1x256xf32> to vector<1x256xf32>
    %198 = vector.broadcast %197 : vector<1x256xf32> to vector<16x256xf32>
    %199 = arith.mulf %195, %198 : vector<16x256xf32>
    %c144_181 = arith.constant 144 : index
    %c0_182 = arith.constant 0 : index
    %200 = vector.load %arg7[%c144_181, %c0_182] : memref<160x256xf32, #tpu.memory_space<vmem>>, vector<16x256xf32>
    tpu.vector_store %arg7[%c144_181, %c0_182], %199 {strides = array<i32>} : memref<160x256xf32, #tpu.memory_space<vmem>>, vector<16x256xf32>,
    %c2_183 = arith.constant 2 : index
    %c0_184 = arith.constant 0 : index
    %c0_185 = arith.constant 0 : index
    %201 = vector.load %arg3[%c2_183, %c0_184, %c0_185] : memref<3x32x160xf32, #tpu.memory_space<vmem>>, vector<1x32x160xf32>
    %202 = vector.shape_cast %201 : vector<1x32x160xf32> to vector<32x160xf32>
    %c0_186 = arith.constant 0 : index
    %c0_187 = arith.constant 0 : index
    %203 = vector.load %arg7[%c0_186, %c0_187] : memref<160x256xf32, #tpu.memory_space<vmem>>, vector<160x256xf32>
    %cst_188 = arith.constant dense<0.000000e+00> : vector<32x256xf32>
    %204 = tpu.matmul %202, %203, %cst_188 {dimension_numbers = #tpu.dot_dimension_numbers<[1], [0], [0], [1], [0, 0, 1, 1], [], []>} : vector<32x160xf32>, vector<160x256xf32>, vector<32x256xf32> -> vector<32x256xf32>
    %205 = vector.broadcast %0 : vector<32x1xf32> to vector<32x256xf32>
    %206 = arith.mulf %205, %204 : vector<32x256xf32>
    %207 = arith.maximumf %204, %206 : vector<32x256xf32>
    %c0_189 = arith.constant 0 : index
    %c0_190 = arith.constant 0 : index
    %c0_191 = arith.constant 0 : index
    %208 = vector.load %arg6[%c0_189, %c0_190, %c0_191] : memref<1x32x256xf32, #tpu.memory_space<vmem>>, vector<1x32x256xf32>
    %209 = vector.shape_cast %208 : vector<1x32x256xf32> to vector<32x256xf32>
    %210 = vector.shape_cast %207 : vector<32x256xf32> to vector<1x32x256xf32>
    tpu.vector_store %arg6[%c0_189, %c0_190, %c0_191], %210 {strides = array<i32>} : memref<1x32x256xf32, #tpu.memory_space<vmem>>, vector<1x32x256xf32>,
    return
  }
  func.func @transform_0(%arg0: i32) -> (i32, i32, i32) {
    %c0_i32 = arith.constant 0 : i32
    %c0_i32_0 = arith.constant 0 : i32
    %c0_i32_1 = arith.constant 0 : i32
    return %arg0, %c0_i32, %c0_i32_0 : i32, i32, i32
  }
  func.func @transform_1(%arg0: i32) -> (i32, i32, i32) {
    %c0_i32 = arith.constant 0 : i32
    %c0_i32_0 = arith.constant 0 : i32
    %c0_i32_1 = arith.constant 0 : i32
    %c0_i32_2 = arith.constant 0 : i32
    return %c0_i32, %c0_i32_0, %c0_i32_1 : i32, i32, i32
  }
  func.func @transform_2(%arg0: i32) -> (i32, i32, i32) {
    %c0_i32 = arith.constant 0 : i32
    %c0_i32_0 = arith.constant 0 : i32
    %c0_i32_1 = arith.constant 0 : i32
    %c0_i32_2 = arith.constant 0 : i32
    return %c0_i32, %c0_i32_0, %c0_i32_1 : i32, i32, i32
  }
  func.func @transform_3(%arg0: i32) -> (i32, i32) {
    %c0_i32 = arith.constant 0 : i32
    %c0_i32_0 = arith.constant 0 : i32
    %c0_i32_1 = arith.constant 0 : i32
    return %c0_i32, %c0_i32_0 : i32, i32
  }
  func.func @transform_4(%arg0: i32) -> (i32, i32, i32) {
    %c0_i32 = arith.constant 0 : i32
    %c0_i32_0 = arith.constant 0 : i32
    %c0_i32_1 = arith.constant 0 : i32
    %c0_i32_2 = arith.constant 0 : i32
    return %c0_i32, %c0_i32_0, %c0_i32_1 : i32, i32, i32
  }
  func.func @transform_5(%arg0: i32) -> (i32, i32, i32) {
    %c0_i32 = arith.constant 0 : i32
    %c0_i32_0 = arith.constant 0 : i32
    %c0_i32_1 = arith.constant 0 : i32
    return %arg0, %c0_i32, %c0_i32_0 : i32, i32, i32
  }
}

</mosaic_0001>

<llo_original>
// kernel: tpu_custom_call.1
$region0: #{tpu_custom_call.1}
  #allocation0 [shape = 'u32[]', space=smem, size = 0x4, offset = 0x4, fixed_abs, tag = 'smem constant byte address 0x4 - core index']
  #allocation1 [shape = 'u32[144,128]{1,0:T(1,128)}', space=vmem, size = 0x12000, scoped, tag = 'internal scratch']
  #allocation2 [shape = 'f32[160,256]{1,0:T(8,128)}', space=vmem, size = 0x28000, scoped, tag = 'scratch operand']
  %s0 = inlined_call_operand.hbm [shape: f32[2,32,256], index: 0, kind: input, shape index: {}]
  %s1 = inlined_call_operand.hbm [shape: f32[3,16,16], index: 1, kind: input, shape index: {}]
  %s2 = inlined_call_operand.hbm [shape: f32[3,32,160], index: 2, kind: input, shape index: {}]
  %s3 = inlined_call_operand.vmem [shape: f32[32,1], index: 3, kind: input, shape index: {}]
  %s4 = inlined_call_operand.vmem [shape: f32[9,1,256], index: 4, kind: input, shape index: {}]
  %s5 = inlined_call_operand.hbm [shape: f32[2,32,256], index: 5, kind: output, shape index: {}]
  %s6 = sld [smem:[#allocation0]]
  $region65: #{tpu_custom_call.1} parent=0
    _
  %s8 = ssub.s32 1, %s6
  %s9 = scalar_select 0, %s8, %s6
  $region1: #{tpu_custom_call.1} parent=0
    #allocation3 [shape = 'u8[65536]{0}', space=vmem, size = 0x10000, scoped, tag = 'input window, operand 0']
    #allocation4 [shape = 's32[2]{0}', space=sflag, size = 0x8, scoped, tag = 'scoped memory for tpu_custom_call.1']
    #allocation5 [shape = 's32[2]{0}', space=sflag, size = 0x8, scoped, tag = 'scoped memory for tpu_custom_call.1']
    #allocation6 [shape = 'u8[24576]{0}', space=vmem, size = 0x6000, scoped, tag = 'input window, operand 1, single buffered']
    #allocation7 [shape = 's32[1]{0}', space=sflag, size = 0x4, scoped, tag = 'scoped memory for tpu_custom_call.1']
    #allocation8 [shape = 'u8[98304]{0}', space=vmem, size = 0x18000, scoped, tag = 'input window, operand 2, single buffered']
    #allocation9 [shape = 'u8[65536]{0}', space=vmem, size = 0x10000, scoped, tag = 'output window, operand 0']
    %10 = vsyncpa [#allocation4], 0
    %s11 = scalar_lea.sflag [#allocation4], 1
    %12 = vsyncpa %s11, 0
    %13 = vsyncpa [#allocation7], 0
    %14 = vsyncpa [#allocation5], 0
    %s15 = scalar_lea.sflag [#allocation5], 1
    %16 = vsyncpa %s15, 0
    loop: start=0, step=1, limit=4
    $region2: #{tpu_custom_call.1} parent=1 // loop_pre_header
      _
    $region3: #{tpu_custom_call.1} parent=1 // loop_header
      %s18 = sphi 0, %s22
      %p19 = scmp.ge.s32.totalorder %s18, 4
      %s28 = sphi 0, %s30
      %s31 = sphi 0, %s28
      %s32 = sphi 0, %s31
      %s48 = sphi 0, %s32
      %s52 = sphi 0, %s52
      %s54 = sphi 0, %s52
      %s55 = sphi 0, %s54
      %s69 = sphi 0, %s55
      %s73 = sphi 0, %s73
      %s75 = sphi 0, %s73
      %s76 = sphi 0, %s75
      %s90 = sphi 0, %s76
      %s94 = sphi 0, %s94
      %s96 = sphi 0, %s94
      %s97 = sphi 0, %s96
      %s111 = sphi 0, %s97
      %s115 = sphi 0, %s115
      %s117 = sphi 0, %s115
      %s118 = sphi 0, %s117
      %s132 = sphi 0, %s118
      %s138 = sphi 0, %s140
      %s141 = sphi 0, %s138
      %s142 = sphi 0, %s141
      %s158 = sphi 0, %s142
    $region4: #{tpu_custom_call.1} parent=1 // loop_header_branch
      %21 = sbr.rel (%p19) target = $region8
    $region5: #{tpu_custom_call.1} parent=1 // loop_body
      %s23 = ssub.s32 %s18, 1
      %s24 = ssub.s32 %s18, 2
      %s25 = sadd.s32 %s18, 1
      %s26 = ssub.s32 %s18, %s25
      %p27 = scmp.eq.s32.totalorder %s26, 0
      %s29 = sadd.s32 %s28, 1
      %s30 = scalar_select %p27, %s28, %s29
      %p33 = pneg %p27
      %p34 = scmp.eq.s32.totalorder %s18, 1
      %p35 = por %p33, %p34
      %p36 = scmp.ne.s32.totalorder %s28, %s31
      %p37 = scmp.eq.s32.totalorder %s18, 0
      %p38 = por %p36, %p37
      %p39 = scmp.ne.s32.totalorder %s28, %s31
      %p40 = scmp.eq.s32.totalorder %s23, 1
      %p41 = por %p39, %p40
      %p42 = scmp.ne.s32.totalorder %s31, %s32
      %p43 = scmp.eq.s32.totalorder %s23, 0
      %p44 = por %p42, %p43
      %p45 = scmp.ne.s32.totalorder %s31, %s32
      %p46 = scmp.eq.s32.totalorder %s24, 1
      %p47 = por %p45, %p46
      %p49 = scmp.ne.s32.totalorder %s32, %s48
      %p50 = scmp.eq.s32.totalorder %s24, 0
      %p51 = por %p49, %p50
      %s53 = sadd.s32 %s52, 1
      %p56 = scmp.eq.s32.totalorder %s18, 1
      %p57 = scmp.ne.s32.totalorder %s52, %s54
      %p58 = scmp.eq.s32.totalorder %s18, 0
      %p59 = por %p57, %p58
      %p60 = scmp.ne.s32.totalorder %s52, %s54
      %p61 = scmp.eq.s32.totalorder %s23, 1
      %p62 = por %p60, %p61
      %p63 = scmp.ne.s32.totalorder %s54, %s55
      %p64 = scmp.eq.s32.totalorder %s23, 0
      %p65 = por %p63, %p64
      %p66 = scmp.ne.s32.totalorder %s54, %s55
      %p67 = scmp.eq.s32.totalorder %s24, 1
      %p68 = por %p66, %p67
      %p70 = scmp.ne.s32.totalorder %s55, %s69
      %p71 = scmp.eq.s32.totalorder %s24, 0
      %p72 = por %p70, %p71
      %s74 = sadd.s32 %s73, 1
      %p77 = scmp.eq.s32.totalorder %s18, 1
      %p78 = scmp.ne.s32.totalorder %s73, %s75
      %p79 = scmp.eq.s32.totalorder %s18, 0
      %p80 = por %p78, %p79
      %p81 = scmp.ne.s32.totalorder %s73, %s75
      %p82 = scmp.eq.s32.totalorder %s23, 1
      %p83 = por %p81, %p82
      %p84 = scmp.ne.s32.totalorder %s75, %s76
      %p85 = scmp.eq.s32.totalorder %s23, 0
      %p86 = por %p84, %p85
      %p87 = scmp.ne.s32.totalorder %s75, %s76
      %p88 = scmp.eq.s32.totalorder %s24, 1
      %p89 = por %p87, %p88
      %p91 = scmp.ne.s32.totalorder %s76, %s90
      %p92 = scmp.eq.s32.totalorder %s24, 0
      %p93 = por %p91, %p92
      %s95 = sadd.s32 %s94, 1
      %p98 = scmp.eq.s32.totalorder %s18, 1
      %p99 = scmp.ne.s32.totalorder %s94, %s96
      %p100 = scmp.eq.s32.totalorder %s18, 0
      %p101 = por %p99, %p100
      %p102 = scmp.ne.s32.totalorder %s94, %s96
      %p103 = scmp.eq.s32.totalorder %s23, 1
      %p104 = por %p102, %p103
      %p105 = scmp.ne.s32.totalorder %s96, %s97
      %p106 = scmp.eq.s32.totalorder %s23, 0
      %p107 = por %p105, %p106
      %p108 = scmp.ne.s32.totalorder %s96, %s97
      %p109 = scmp.eq.s32.totalorder %s24, 1
      %p110 = por %p108, %p109
      %p112 = scmp.ne.s32.totalorder %s97, %s111
      %p113 = scmp.eq.s32.totalorder %s24, 0
      %p114 = por %p112, %p113
      %s116 = sadd.s32 %s115, 1
      %p119 = scmp.eq.s32.totalorder %s18, 1
      %p120 = scmp.ne.s32.totalorder %s115, %s117
      %p121 = scmp.eq.s32.totalorder %s18, 0
      %p122 = por %p120, %p121
      %p123 = scmp.ne.s32.totalorder %s115, %s117
      %p124 = scmp.eq.s32.totalorder %s23, 1
      %p125 = por %p123, %p124
      %p126 = scmp.ne.s32.totalorder %s117, %s118
      %p127 = scmp.eq.s32.totalorder %s23, 0
      %p128 = por %p126, %p127
      %p129 = scmp.ne.s32.totalorder %s117, %s118
      %p130 = scmp.eq.s32.totalorder %s24, 1
      %p131 = por %p129, %p130
      %p133 = scmp.ne.s32.totalorder %s118, %s132
      %p134 = scmp.eq.s32.totalorder %s24, 0
      %p135 = por %p133, %p134
      %s136 = ssub.s32 %s18, %s25
      %p137 = scmp.eq.s32.totalorder %s136, 0
      %s139 = sadd.s32 %s138, 1
      %s140 = scalar_select %p137, %s138, %s139
      %p143 = pneg %p137
      %p144 = scmp.eq.s32.totalorder %s18, 1
      %p145 = por %p143, %p144
      %p146 = scmp.ne.s32.totalorder %s138, %s141
      %p147 = scmp.eq.s32.totalorder %s18, 0
      %p148 = por %p146, %p147
      %p149 = scmp.ne.s32.totalorder %s138, %s141
      %p150 = scmp.eq.s32.totalorder %s23, 1
      %p151 = por %p149, %p150
      %p152 = scmp.ne.s32.totalorder %s141, %s142
      %p153 = scmp.eq.s32.totalorder %s23, 0
      %p154 = por %p152, %p153
      %p155 = scmp.ne.s32.totalorder %s141, %s142
      %p156 = scmp.eq.s32.totalorder %s24, 1
      %p157 = por %p155, %p156
      %p159 = scmp.ne.s32.totalorder %s142, %s158
      %p160 = scmp.eq.s32.totalorder %s24, 0
      %p161 = por %p159, %p160
      %p162 = scmp.le.s32.totalorder 1, %s18
      %p163 = scmp.lt.s32.totalorder %s18, 3
      %p164 = pnand %p162, %p163
      %p165 = pneg %p164
      // Predicated region
      $region9: #{tpu_custom_call.1} parent=5 // pred_check
        _
      $region10: #{tpu_custom_call.1} parent=5 // pred_check_branch
        %167 = sbr.rel (%p164) target = $region12
      $region11: #{tpu_custom_call.1} parent=5 // pred_region
        %s168 = ssub.s32 %s18, 1
        // Predicated region
        $region13: #{tpu_custom_call.1} parent=11 // pred_check
          %p169 = pneg %p65
        $region14: #{tpu_custom_call.1} parent=11 // pred_check_branch
          %171 = sbr.rel (%p169) target = $region16
        $region15: #{tpu_custom_call.1} parent=11 // pred_region
          %s173 = ssub.s32 768, 768
          %174 = vsyncadd [#allocation7], %s173
          %s175 = sshll.u32 [#allocation6], 4
          %s176 = int_to_ptr.vmem [resolvable:$true] %s175
          %181 = dma.hbm_to_vmem [thread:$0]  %s1, 768, %s176, [#allocation7], 128, 128, 8
        $region16: #{tpu_custom_call.1} parent=11 // pred_fallthru
          _
        // Predicated region
        $region17: #{tpu_custom_call.1} parent=11 // pred_check
          %p182 = pneg %p86
        $region18: #{tpu_custom_call.1} parent=11 // pred_check_branch
          %184 = sbr.rel (%p182) target = $region20
        $region19: #{tpu_custom_call.1} parent=11 // pred_region
          %s186 = ssub.s32 3072, 3072
          %187 = vsyncadd [#allocation7], %s186
          %s188 = sshll.u32 [#allocation8], 4
          %s189 = int_to_ptr.vmem [resolvable:$true] %s188
          %194 = dma.hbm_to_vmem [thread:$0]  %s2, 3072, %s189, [#allocation7], 256, 256, 16
        $region20: #{tpu_custom_call.1} parent=11 // pred_fallthru
          _
        // Predicated region
        $region21: #{tpu_custom_call.1} parent=11 // pred_check
          %p195 = pneg %p107
        $region22: #{tpu_custom_call.1} parent=11 // pred_check_branch
          %197 = sbr.rel (%p195) target = $region24
        $region23: #{tpu_custom_call.1} parent=11 // pred_region
          _
        $region24: #{tpu_custom_call.1} parent=11 // pred_fallthru
          _
        // Predicated region
        $region25: #{tpu_custom_call.1} parent=11 // pred_check
          %p198 = pneg %p128
        $region26: #{tpu_custom_call.1} parent=11 // pred_check_branch
          %200 = sbr.rel (%p198) target = $region28
        $region27: #{tpu_custom_call.1} parent=11 // pred_region
          _
        $region28: #{tpu_custom_call.1} parent=11 // pred_fallthru
          _
      $region12: #{tpu_custom_call.1} parent=5 // pred_fallthru
        _
      %p201 = scmp.lt.s32.totalorder %s18, 2
      // Predicated region
      $region29: #{tpu_custom_call.1} parent=5 // pred_check
        %p202 = pneg %p201
      $region30: #{tpu_custom_call.1} parent=5 // pred_check_branch
        %204 = sbr.rel (%p202) target = $region32
      $region31: #{tpu_custom_call.1} parent=5 // pred_region
        // Predicated region
        $region33: #{tpu_custom_call.1} parent=31 // pred_check
          %p205 = pneg %p38
        $region34: #{tpu_custom_call.1} parent=31 // pred_check_branch
          %207 = sbr.rel (%p205) target = $region36
        $region35: #{tpu_custom_call.1} parent=31 // pred_region
          %s208 = sand.u32 %s28, 1
          %s209 = scalar_lea.sflag [#allocation4], %s208
          %s210 = sand.u32 %s28, 1
          %s211 = smul.addr %s210, 64
          %s212 = scalar_lea.vmem [#allocation3], %s211
          %s214 = ssub.s32 1024, 1024
          %215 = vsyncadd %s209, %s214
          %s216 = smul.addr %s18, 8
          %s217 = smul.addr %s216, 128
          %s218 = scalar_lea.hbm %s0, %s217
          %s219 = sshll.u32 %s212, 4
          %s220 = int_to_ptr.vmem [resolvable:$true] %s219
          %225 = dma.hbm_to_vmem [thread:$0]  %s218, 1024, %s220, %s209, 256, 256, 16
        $region36: #{tpu_custom_call.1} parent=31 // pred_fallthru
          _
      $region32: #{tpu_custom_call.1} parent=5 // pred_fallthru
        _
      %p226 = scmp.le.s32.totalorder 1, %s18
      %p227 = scmp.lt.s32.totalorder %s18, 3
      %p228 = pnand %p226, %p227
      %p229 = pneg %p228
      // Predicated region
      $region37: #{tpu_custom_call.1} parent=5 // pred_check
        _
      $region38: #{tpu_custom_call.1} parent=5 // pred_check_branch
        %231 = sbr.rel (%p228) target = $region40
      $region39: #{tpu_custom_call.1} parent=5 // pred_region
        %s232 = ssub.s32 %s18, 1
        %s233 = sand.u32 %s31, 1
        %s234 = scalar_lea.sflag [#allocation4], %s233
        %s235 = sand.u32 %s31, 1
        %s236 = smul.addr %s235, 64
        %s237 = scalar_lea.vmem [#allocation3], %s236
        // Predicated region
        $region41: #{tpu_custom_call.1} parent=39 // pred_check
          %p238 = pneg %p44
        $region42: #{tpu_custom_call.1} parent=39 // pred_check_branch
          %240 = sbr.rel (%p238) target = $region44
        $region43: #{tpu_custom_call.1} parent=39 // pred_region
          %241 = dma.done %s234, 1024
        $region44: #{tpu_custom_call.1} parent=39 // pred_fallthru
          _
        // Predicated region
        $region45: #{tpu_custom_call.1} parent=39 // pred_check
          %p242 = pneg %p65
        $region46: #{tpu_custom_call.1} parent=39 // pred_check_branch
          %244 = sbr.rel (%p242) target = $region48
        $region47: #{tpu_custom_call.1} parent=39 // pred_region
          %245 = dma.done [#allocation7], 768
        $region48: #{tpu_custom_call.1} parent=39 // pred_fallthru
          _
        // Predicated region
        $region49: #{tpu_custom_call.1} parent=39 // pred_check
          %p246 = pneg %p86
        $region50: #{tpu_custom_call.1} parent=39 // pred_check_branch
          %248 = sbr.rel (%p246) target = $region52
        $region51: #{tpu_custom_call.1} parent=39 // pred_region
          %249 = dma.done [#allocation7], 3072
        $region52: #{tpu_custom_call.1} parent=39 // pred_fallthru
          _
        %s250 = sand.u32 %s31, 1
        %s251 = scalar_lea.sflag [#allocation4], %s250
        %s252 = sand.u32 %s31, 1
        %s253 = smul.addr %s252, 64
        %s254 = scalar_lea.vmem [#allocation3], %s253
        %p255 = pneg %p44
        %p256 = pneg %p41
        %p257 = pneg %p65
        %p258 = pneg %p62
        %p259 = pneg %p86
        %p260 = pneg %p83
        %p261 = pneg %p107
        %p262 = pneg %p104
        %p263 = pneg %p128
        %p264 = pneg %p125
        %p265 = pneg %p154
        %p266 = pneg %p151
        %s267 = sand.u32 %s141, 1
        %s268 = scalar_lea.sflag [#allocation5], %s267
        %s269 = sand.u32 %s141, 1
        %s270 = smul.addr %s269, 64
        %s271 = scalar_lea.vmem [#allocation9], %s270
        %v272 = vld [vmem:[%s3] sm:$0xff]
        %v273 = vld [vmem:[%s3 + $0x8] sm:$0xff]
        %v274 = vld [vmem:[%s3 + $0x10] sm:$0xff]
        %v275 = vld [vmem:[%s3 + $0x18] sm:$0xff]
        %v276 = vld [vmem:[%s237] sm:$0xff]
        %v277 = vld [vmem:[%s237 + $0x8] sm:$0xff]
        %v278 = vld [vmem:[%s237 + $0x10] sm:$0xff]
        %v279 = vld [vmem:[%s237 + $0x18] sm:$0xff]
        %280 = vst [vmem:[#allocation2] sm:$0xff] %v276
        %281 = vst [vmem:[#allocation2 + $0x8] sm:$0xff] %v277
        %282 = vst [vmem:[#allocation2 + $0x10] sm:$0xff] %v278
        %283 = vst [vmem:[#allocation2 + $0x18] sm:$0xff] %v279
        %v284 = vld [vmem:[#allocation6] sm:$0xff]
        %v285 = vld [vmem:[#allocation6 + $0x8] sm:$0xff]
        %v286 = vld [vmem:[%s237 + $0x20] sm:$0xff]
        %v287 = vld [vmem:[%s237 + $0x28] sm:$0xff]
        %v288 = vld [vmem:[%s237 + $0x30] sm:$0xff]
        %v289 = vld [vmem:[%s237 + $0x38] sm:$0xff]
        %vm290 = vcmask 130048
        %v292 = vsel %vm290, %v284, 0
        %v295 = vsel %vm290, %v285, 0
        %297 = vmatprep.subr.mxu0 %v287
        %298 = vmatpush1.msra.mxu0 %v286
        %299 = vmatprep.subr.mxu0 %v289
        %300 = vmatpush1.msra.mxu0 %v288
        %301 = vmatprep.subr.mxu0 0.0
        %302 = vmatpush1.msra.mxu0 0.0
        %303 = vmatprep.subr.mxu0 0.0
        %304 = vmatpush1.msra.mxu0 0.0
        %305 = vmatprep.subr.mxu0 0.0
        %306 = vmatpush1.msra.mxu0 0.0
        %307 = vmatprep.subr.mxu0 0.0
        %308 = vmatpush1.msra.mxu0 0.0
        %309 = vmatprep.subr.mxu0 0.0
        %310 = vmatpush1.msra.mxu0 0.0
        %311 = vmatprep.subr.mxu0 0.0
        %312 = vmatpush1.msra.mxu0 0.0
        %313 = vmatprep.subr.mxu0 0.0
        %314 = vmatpush1.msra.mxu0 0.0
        %315 = vmatprep.subr.mxu0 0.0
        %316 = vmatpush1.msra.mxu0 0.0
        %317 = vmatprep.subr.mxu0 0.0
        %318 = vmatpush1.msra.mxu0 0.0
        %319 = vmatprep.subr.mxu0 0.0
        %320 = vmatpush1.msra.mxu0 0.0
        %321 = vmatprep.subr.mxu0 0.0
        %322 = vmatpush1.msra.mxu0 0.0
        %323 = vmatprep.subr.mxu0 0.0
        %324 = vmatpush1.msra.mxu0 0.0
        %325 = vmatprep.subr.mxu0 0.0
        %326 = vmatpush1.msra.mxu0 0.0
        %327 = vmatprep.subr.mxu0 0.0
        %328 = vmatpush1.msra.mxu0 0.0
        %329 = vmatprep.subr.mxu0 0.0
        %330 = vmatpush1.msra.mxu0 0.0
        %331 = vmatprep.subr.mxu0 0.0
        %332 = vmatpush1.msra.mxu0 0.0
        %333 = vmatprep.subr.mxu0 0.0
        %334 = vmatpush1.msra.mxu0 0.0
        %335 = vmatprep.subr.mxu0 0.0
        %336 = vmatpush1.msra.mxu0 0.0
        %337 = vmatprep.subr.mxu0 0.0
        %338 = vmatpush1.msra.mxu0 0.0
        %339 = vmatprep.subr.mxu0 0.0
        %340 = vmatpush1.msra.mxu0 0.0
        %341 = vmatprep.subr.mxu0 0.0
        %342 = vmatpush1.msra.mxu0 0.0
        %343 = vmatprep.subr.mxu0 0.0
        %344 = vmatpush1.msra.mxu0 0.0
        %345 = vmatprep.subr.mxu0 0.0
        %346 = vmatpush1.msra.mxu0 0.0
        %347 = vmatprep.subr.mxu0 0.0
        %348 = vmatpush1.msra.mxu0 0.0
        %349 = vmatprep.subr.mxu0 0.0
        %350 = vmatpush1.msra.mxu0 0.0
        %351 = vmatprep.subr.mxu0 0.0
        %352 = vmatpush1.msra.mxu0 0.0
        %353 = vmatprep.subr.mxu0 0.0
        %354 = vmatpush1.msra.mxu0 0.0
        %355 = vmatprep.subr.mxu0 0.0
        %356 = vmatpush1.msra.mxu0 0.0
        %357 = vmatprep.subr.mxu0 0.0
        %358 = vmatpush1.msra.mxu0 0.0
        %359 = vmatprep.subr.mxu0 0.0
        %360 = vmatpush1.msra.mxu0 0.0
        %361 = vmatprep.mubr.f32.mxu0 0.0
        %362 = vmatmul.mubr.f32.gmra.mrb[0].mxu0 %v292
        %v363 = vpop.f32.mrb[0].mxu0
        %v364 = vadd.f32 0.0, %v363
        %v365 = vpop.f32.mrb[0].mxu0
        %v366 = vadd.f32 0.0, %v365
        %367 = vmatprep.mubr.f32.mxu0 0.0
        %368 = vmatmul.mubr.f32.gmra.mrb[0].mxu0 %v295
        %v369 = vpop.f32.mrb[0].mxu0
        %v370 = vadd.f32 0.0, %v369
        %v371 = vpop.f32.mrb[0].mxu0
        %v372 = vadd.f32 0.0, %v371
        %373 = vdwg.mxu0
        %v374 = vmul.f32 %v364, 0.1
        %v375 = vmul.f32 %v366, 0.1
        %v376 = vmul.f32 %v370, 0.1
        %v377 = vmul.f32 %v372, 0.1
        %v378 = vmax.f32 %v364, %v374
        %v379 = vmax.f32 %v366, %v375
        %v380 = vmax.f32 %v370, %v376
        %v381 = vmax.f32 %v372, %v377
        %382 = vrot.lane.b32.xlu0 %v378, 17
        %v383 = vpop.permute.xlu0 %382
        %384 = vrot.lane.b32.xlu0 %v380, 17
        %v385 = vpop.permute.xlu0 %384
        %386 = vrot.lane.b32.xlu0 %v379, 17
        %v387 = vpop.permute.xlu0 %386
        %388 = vrot.lane.b32.xlu0 %v381, 17
        %v389 = vpop.permute.xlu0 %388
        %v390 = vlaneseq
        %v391 = vand.u32 %v390, 127
        %vm392 = vcmp.lt.s32.totalorder %v391, 17
        %v393 = vsel %vm392, %v383, %v387
        %v394 = vsel %vm392, %v385, %v389
        %v395 = vsel %vm392, %v387, %v383
        %v396 = vsel %vm392, %v389, %v385
        %v397 = vld [vmem:[%s4] sm:$0x3]
        %v399 = vlaneseq
        %v400 = vshrl.u32 %v399, 7
        %v401 = vsub.s32 0, %v400
        %v402 = vrot.slane %v397, %v401
        %v403 = vlaneseq
        %v404 = vshrl.u32 %v403, 7
        %v405 = vsub.s32 1, %v404
        %v406 = vrot.slane %v397, %v405
        %v409 = vmul.f32 %v395, %v402
        %v410 = vmul.f32 %v393, %v406
        %v411 = vmul.f32 %v396, %v402
        %v412 = vmul.f32 %v394, %v406
        %413 = vst [vmem:[#allocation2 + $0x20] sm:$0xff] %v409
        %414 = vst [vmem:[#allocation2 + $0x28] sm:$0xff] %v410
        %415 = vst [vmem:[#allocation2 + $0x30] sm:$0xff] %v411
        %416 = vst [vmem:[#allocation2 + $0x38] sm:$0xff] %v412
        %417 = vrot.lane.b32.xlu0 %v378, 16
        %v418 = vpop.permute.xlu0 %417
        %419 = vrot.lane.b32.xlu0 %v380, 16
        %v420 = vpop.permute.xlu0 %419
        %421 = vrot.lane.b32.xlu0 %v379, 16
        %v422 = vpop.permute.xlu0 %421
        %423 = vrot.lane.b32.xlu0 %v381, 16
        %v424 = vpop.permute.xlu0 %423
        %vm425 = vcmp.lt.s32.totalorder %v391, 16
        %v426 = vsel %vm425, %v418, %v422
        %v427 = vsel %vm425, %v420, %v424
        %v428 = vsel %vm425, %v422, %v418
        %v429 = vsel %vm425, %v424, %v420
        %s430 = scalar_lea.vmem %s4, 2
        %v431 = vld [vmem:[%s430] sm:$0x3]
        %v433 = vlaneseq
        %v434 = vshrl.u32 %v433, 7
        %v435 = vsub.s32 0, %v434
        %v436 = vrot.slane %v431, %v435
        %v437 = vlaneseq
        %v438 = vshrl.u32 %v437, 7
        %v439 = vsub.s32 1, %v438
        %v440 = vrot.slane %v431, %v439
        %v443 = vmul.f32 %v428, %v436
        %v444 = vmul.f32 %v426, %v440
        %v445 = vmul.f32 %v429, %v436
        %v446 = vmul.f32 %v427, %v440
        %447 = vst [vmem:[#allocation2 + $0x40] sm:$0xff] %v443
        %448 = vst [vmem:[#allocation2 + $0x48] sm:$0xff] %v444
        %449 = vst [vmem:[#allocation2 + $0x50] sm:$0xff] %v445
        %450 = vst [vmem:[#allocation2 + $0x58] sm:$0xff] %v446
        %451 = vrot.lane.b32.xlu0 %v378, 15
        %v452 = vpop.permute.xlu0 %451
        %453 = vrot.lane.b32.xlu0 %v380, 15
        %v454 = vpop.permute.xlu0 %453
        %455 = vrot.lane.b32.xlu0 %v379, 15
        %v456 = vpop.permute.xlu0 %455
        %457 = vrot.lane.b32.xlu0 %v381, 15
        %v458 = vpop.permute.xlu0 %457
        %vm459 = vcmp.lt.s32.totalorder %v391, 15
        %v460 = vsel %vm459, %v452, %v456
        %v461 = vsel %vm459, %v454, %v458
        %v462 = vsel %vm459, %v456, %v452
        %v463 = vsel %vm459, %v458, %v454
        %s464 = scalar_lea.vmem %s4, 4
        %v465 = vld [vmem:[%s464] sm:$0x3]
        %v467 = vlaneseq
        %v468 = vshrl.u32 %v467, 7
        %v469 = vsub.s32 0, %v468
        %v470 = vrot.slane %v465, %v469
        %v471 = vlaneseq
        %v472 = vshrl.u32 %v471, 7
        %v473 = vsub.s32 1, %v472
        %v474 = vrot.slane %v465, %v473
        %v477 = vmul.f32 %v462, %v470
        %v478 = vmul.f32 %v460, %v474
        %v479 = vmul.f32 %v463, %v470
        %v480 = vmul.f32 %v461, %v474
        %481 = vst [vmem:[#allocation2 + $0x60] sm:$0xff] %v477
        %482 = vst [vmem:[#allocation2 + $0x68] sm:$0xff] %v478
        %483 = vst [vmem:[#allocation2 + $0x70] sm:$0xff] %v479
        %484 = vst [vmem:[#allocation2 + $0x78] sm:$0xff] %v480
        %485 = vrot.lane.b32.xlu0 %v378, 1
        %v486 = vpop.permute.xlu0 %485
        %487 = vrot.lane.b32.xlu0 %v380, 1
        %v488 = vpop.permute.xlu0 %487
        %489 = vrot.lane.b32.xlu0 %v379, 1
        %v490 = vpop.permute.xlu0 %489
        %491 = vrot.lane.b32.xlu0 %v381, 1
        %v492 = vpop.permute.xlu0 %491
        %vm493 = vcmp.lt.s32.totalorder %v391, 1
        %v494 = vsel %vm493, %v486, %v490
        %v495 = vsel %vm493, %v488, %v492
        %v496 = vsel %vm493, %v490, %v486
        %v497 = vsel %vm493, %v492, %v488
        %s498 = scalar_lea.vmem %s4, 6
        %v499 = vld [vmem:[%s498] sm:$0x3]
        %v501 = vlaneseq
        %v502 = vshrl.u32 %v501, 7
        %v503 = vsub.s32 0, %v502
        %v504 = vrot.slane %v499, %v503
        %v505 = vlaneseq
        %v506 = vshrl.u32 %v505, 7
        %v507 = vsub.s32 1, %v506
        %v508 = vrot.slane %v499, %v507
        %v511 = vmul.f32 %v496, %v504
        %v512 = vmul.f32 %v494, %v508
        %v513 = vmul.f32 %v497, %v504
        %v514 = vmul.f32 %v495, %v508
        %515 = vst [vmem:[#allocation2 + $0x80] sm:$0xff] %v511
        %516 = vst [vmem:[#allocation2 + $0x88] sm:$0xff] %v512
        %517 = vst [vmem:[#allocation2 + $0x90] sm:$0xff] %v513
        %518 = vst [vmem:[#allocation2 + $0x98] sm:$0xff] %v514
        %519 = vst [vmem:[#allocation2 + $0xa0] sm:$0xff] %v378
        %520 = vst [vmem:[#allocation2 + $0xa8] sm:$0xff] %v379
        %521 = vst [vmem:[#allocation2 + $0xb0] sm:$0xff] %v380
        %522 = vst [vmem:[#allocation2 + $0xb8] sm:$0xff] %v381
        %523 = vrot.lane.b32.xlu0 %v378, 127
        %v524 = vpop.permute.xlu0 %523
        %525 = vrot.lane.b32.xlu0 %v380, 127
        %v526 = vpop.permute.xlu0 %525
        %527 = vrot.lane.b32.xlu0 %v379, 127
        %v528 = vpop.permute.xlu0 %527
        %529 = vrot.lane.b32.xlu0 %v381, 127
        %v530 = vpop.permute.xlu0 %529
        %vm531 = vcmp.lt.s32.totalorder %v391, 127
        %v532 = vsel %vm531, %v524, %v528
        %v533 = vsel %vm531, %v526, %v530
        %v534 = vsel %vm531, %v528, %v524
        %v535 = vsel %vm531, %v530, %v526
        %s536 = scalar_lea.vmem %s4, 10
        %v537 = vld [vmem:[%s536] sm:$0x3]
        %v539 = vlaneseq
        %v540 = vshrl.u32 %v539, 7
        %v541 = vsub.s32 0, %v540
        %v542 = vrot.slane %v537, %v541
        %v543 = vlaneseq
        %v544 = vshrl.u32 %v543, 7
        %v545 = vsub.s32 1, %v544
        %v546 = vrot.slane %v537, %v545
        %v549 = vmul.f32 %v532, %v542
        %v550 = vmul.f32 %v534, %v546
        %v551 = vmul.f32 %v533, %v542
        %v552 = vmul.f32 %v535, %v546
        %553 = vst [vmem:[#allocation2 + $0xc0] sm:$0xff] %v549
        %554 = vst [vmem:[#allocation2 + $0xc8] sm:$0xff] %v550
        %555 = vst [vmem:[#allocation2 + $0xd0] sm:$0xff] %v551
        %556 = vst [vmem:[#allocation2 + $0xd8] sm:$0xff] %v552
        %557 = vrot.lane.b32.xlu0 %v378, 113
        %v558 = vpop.permute.xlu0 %557
        %559 = vrot.lane.b32.xlu0 %v380, 113
        %v560 = vpop.permute.xlu0 %559
        %561 = vrot.lane.b32.xlu0 %v379, 113
        %v562 = vpop.permute.xlu0 %561
        %563 = vrot.lane.b32.xlu0 %v381, 113
        %v564 = vpop.permute.xlu0 %563
        %vm565 = vcmp.lt.s32.totalorder %v391, 113
        %v566 = vsel %vm565, %v558, %v562
        %v567 = vsel %vm565, %v560, %v564
        %v568 = vsel %vm565, %v562, %v558
        %v569 = vsel %vm565, %v564, %v560
        %s570 = scalar_lea.vmem %s4, 12
        %v571 = vld [vmem:[%s570] sm:$0x3]
        %v573 = vlaneseq
        %v574 = vshrl.u32 %v573, 7
        %v575 = vsub.s32 0, %v574
        %v576 = vrot.slane %v571, %v575
        %v577 = vlaneseq
        %v578 = vshrl.u32 %v577, 7
        %v579 = vsub.s32 1, %v578
        %v580 = vrot.slane %v571, %v579
        %v583 = vmul.f32 %v566, %v576
        %v584 = vmul.f32 %v568, %v580
        %v585 = vmul.f32 %v567, %v576
        %v586 = vmul.f32 %v569, %v580
        %587 = vst [vmem:[#allocation2 + $0xe0] sm:$0xff] %v583
        %588 = vst [vmem:[#allocation2 + $0xe8] sm:$0xff] %v584
        %589 = vst [vmem:[#allocation2 + $0xf0] sm:$0xff] %v585
        %590 = vst [vmem:[#allocation2 + $0xf8] sm:$0xff] %v586
        %591 = vrot.lane.b32.xlu0 %v378, 112
        %v592 = vpop.permute.xlu0 %591
        %593 = vrot.lane.b32.xlu0 %v380, 112
        %v594 = vpop.permute.xlu0 %593
        %595 = vrot.lane.b32.xlu0 %v379, 112
        %v596 = vpop.permute.xlu0 %595
        %597 = vrot.lane.b32.xlu0 %v381, 112
        %v598 = vpop.permute.xlu0 %597
        %vm599 = vcmp.lt.s32.totalorder %v391, 112
        %v600 = vsel %vm599, %v592, %v596
        %v601 = vsel %vm599, %v594, %v598
        %v602 = vsel %vm599, %v596, %v592
        %v603 = vsel %vm599, %v598, %v594
        %s604 = scalar_lea.vmem %s4, 14
        %v605 = vld [vmem:[%s604] sm:$0x3]
        %v607 = vlaneseq
        %v608 = vshrl.u32 %v607, 7
        %v609 = vsub.s32 0, %v608
        %v610 = vrot.slane %v605, %v609
        %v611 = vlaneseq
        %v612 = vshrl.u32 %v611, 7
        %v613 = vsub.s32 1, %v612
        %v614 = vrot.slane %v605, %v613
        %v617 = vmul.f32 %v600, %v610
        %v618 = vmul.f32 %v602, %v614
        %v619 = vmul.f32 %v601, %v610
        %v620 = vmul.f32 %v603, %v614
        %621 = vst [vmem:[#allocation2 + $0x100] sm:$0xff] %v617
        %622 = vst [vmem:[#allocation2 + $0x108] sm:$0xff] %v618
        %623 = vst [vmem:[#allocation2 + $0x110] sm:$0xff] %v619
        %624 = vst [vmem:[#allocation2 + $0x118] sm:$0xff] %v620
        %625 = vrot.lane.b32.xlu0 %v378, 111
        %v626 = vpop.permute.xlu0 %625
        %627 = vrot.lane.b32.xlu0 %v380, 111
        %v628 = vpop.permute.xlu0 %627
        %629 = vrot.lane.b32.xlu0 %v379, 111
        %v630 = vpop.permute.xlu0 %629
        %631 = vrot.lane.b32.xlu0 %v381, 111
        %v632 = vpop.permute.xlu0 %631
        %vm633 = vcmp.lt.s32.totalorder %v391, 111
        %v634 = vsel %vm633, %v626, %v630
        %v635 = vsel %vm633, %v628, %v632
        %v636 = vsel %vm633, %v630, %v626
        %v637 = vsel %vm633, %v632, %v628
        %s638 = scalar_lea.vmem %s4, 16
        %v639 = vld [vmem:[%s638] sm:$0x3]
        %v641 = vlaneseq
        %v642 = vshrl.u32 %v641, 7
        %v643 = vsub.s32 0, %v642
        %v644 = vrot.slane %v639, %v643
        %v645 = vlaneseq
        %v646 = vshrl.u32 %v645, 7
        %v647 = vsub.s32 1, %v646
        %v648 = vrot.slane %v639, %v647
        %v651 = vmul.f32 %v634, %v644
        %v652 = vmul.f32 %v636, %v648
        %v653 = vmul.f32 %v635, %v644
        %v654 = vmul.f32 %v637, %v648
        %655 = vst [vmem:[#allocation2 + $0x120] sm:$0xff] %v651
        %656 = vst [vmem:[#allocation2 + $0x128] sm:$0xff] %v652
        %657 = vst [vmem:[#allocation2 + $0x130] sm:$0xff] %v653
        %658 = vst [vmem:[#allocation2 + $0x138] sm:$0xff] %v654
        %v659 = vld [vmem:[#allocation8] sm:$0xff]
        %v660 = vld [vmem:[#allocation8 + $0x8] sm:$0xff]
        %v661 = vld [vmem:[#allocation8 + $0x10] sm:$0xff]
        %v662 = vld [vmem:[#allocation8 + $0x18] sm:$0xff]
        %v663 = vld [vmem:[#allocation8 + $0x20] sm:$0xff]
        %v664 = vld [vmem:[#allocation8 + $0x28] sm:$0xff]
        %v665 = vld [vmem:[#allocation8 + $0x30] sm:$0xff]
        %v666 = vld [vmem:[#allocation8 + $0x38] sm:$0xff]
        %v667 = vld [vmem:[#allocation2] sm:$0xff]
        %v668 = vld [vmem:[#allocation2 + $0x8] sm:$0xff]
        %v669 = vld [vmem:[#allocation2 + $0x10] sm:$0xff]
        %v670 = vld [vmem:[#allocation2 + $0x18] sm:$0xff]
        %v671 = vld [vmem:[#allocation2 + $0x20] sm:$0xff]
        %v672 = vld [vmem:[#allocation2 + $0x28] sm:$0xff]
        %v673 = vld [vmem:[#allocation2 + $0x30] sm:$0xff]
        %v674 = vld [vmem:[#allocation2 + $0x38] sm:$0xff]
        %v675 = vld [vmem:[#allocation2 + $0x40] sm:$0xff]
        %v676 = vld [vmem:[#allocation2 + $0x48] sm:$0xff]
        %v677 = vld [vmem:[#allocation2 + $0x50] sm:$0xff]
        %v678 = vld [vmem:[#allocation2 + $0x58] sm:$0xff]
        %v679 = vld [vmem:[#allocation2 + $0x60] sm:$0xff]
        %v680 = vld [vmem:[#allocation2 + $0x68] sm:$0xff]
        %v681 = vld [vmem:[#allocation2 + $0x70] sm:$0xff]
        %v682 = vld [vmem:[#allocation2 + $0x78] sm:$0xff]
        %v683 = vld [vmem:[#allocation2 + $0x80] sm:$0xff]
        %v684 = vld [vmem:[#allocation2 + $0x88] sm:$0xff]
        %v685 = vld [vmem:[#allocation2 + $0x90] sm:$0xff]
        %v686 = vld [vmem:[#allocation2 + $0x98] sm:$0xff]
        %v687 = vld [vmem:[#allocation2 + $0xa0] sm:$0xff]
        %v688 = vld [vmem:[#allocation2 + $0xa8] sm:$0xff]
        %v689 = vld [vmem:[#allocation2 + $0xb0] sm:$0xff]
        %v690 = vld [vmem:[#allocation2 + $0xb8] sm:$0xff]
        %v691 = vld [vmem:[#allocation2 + $0xc0] sm:$0xff]
        %v692 = vld [vmem:[#allocation2 + $0xc8] sm:$0xff]
        %v693 = vld [vmem:[#allocation2 + $0xd0] sm:$0xff]
        %v694 = vld [vmem:[#allocation2 + $0xd8] sm:$0xff]
        %v695 = vld [vmem:[#allocation2 + $0xe0] sm:$0xff]
        %v696 = vld [vmem:[#allocation2 + $0xe8] sm:$0xff]
        %v697 = vld [vmem:[#allocation2 + $0xf0] sm:$0xff]
        %v698 = vld [vmem:[#allocation2 + $0xf8] sm:$0xff]
        %v699 = vld [vmem:[#allocation2 + $0x100] sm:$0xff]
        %v700 = vld [vmem:[#allocation2 + $0x108] sm:$0xff]
        %v701 = vld [vmem:[#allocation2 + $0x110] sm:$0xff]
        %v702 = vld [vmem:[#allocation2 + $0x118] sm:$0xff]
        %v703 = vld [vmem:[#allocation2 + $0x120] sm:$0xff]
        %v704 = vld [vmem:[#allocation2 + $0x128] sm:$0xff]
        %v705 = vld [vmem:[#allocation2 + $0x130] sm:$0xff]
        %v706 = vld [vmem:[#allocation2 + $0x138] sm:$0xff]
        %vm707 = vcmask 261120
        %v709 = vsel %vm707, %v660, 0
        %v712 = vsel %vm707, %v662, 0
        %v715 = vsel %vm707, %v664, 0
        %v718 = vsel %vm707, %v666, 0
        %720 = vmatprep.subr.mxu0 %v668
        %721 = vmatpush1.msra.mxu0 %v667
        %722 = vmatprep.subr.mxu0 %v670
        %723 = vmatpush1.msra.mxu0 %v669
        %724 = vmatprep.subr.mxu0 %v672
        %725 = vmatpush1.msra.mxu0 %v671
        %726 = vmatprep.subr.mxu0 %v674
        %727 = vmatpush1.msra.mxu0 %v673
        %728 = vmatprep.subr.mxu0 %v676
        %729 = vmatpush1.msra.mxu0 %v675
        %730 = vmatprep.subr.mxu0 %v678
        %731 = vmatpush1.msra.mxu0 %v677
        %732 = vmatprep.subr.mxu0 %v680
        %733 = vmatpush1.msra.mxu0 %v679
        %734 = vmatprep.subr.mxu0 %v682
        %735 = vmatpush1.msra.mxu0 %v681
        %736 = vmatprep.subr.mxu0 %v684
        %737 = vmatpush1.msra.mxu0 %v683
        %738 = vmatprep.subr.mxu0 %v686
        %739 = vmatpush1.msra.mxu0 %v685
        %740 = vmatprep.subr.mxu0 %v688
        %741 = vmatpush1.msra.mxu0 %v687
        %742 = vmatprep.subr.mxu0 %v690
        %743 = vmatpush1.msra.mxu0 %v689
        %744 = vmatprep.subr.mxu0 %v692
        %745 = vmatpush1.msra.mxu0 %v691
        %746 = vmatprep.subr.mxu0 %v694
        %747 = vmatpush1.msra.mxu0 %v693
        %748 = vmatprep.subr.mxu0 %v696
        %749 = vmatpush1.msra.mxu0 %v695
        %750 = vmatprep.subr.mxu0 %v698
        %751 = vmatpush1.msra.mxu0 %v697
        %752 = vmatprep.subr.mxu0 %v700
        %753 = vmatpush1.msra.mxu0 %v699
        %754 = vmatprep.subr.mxu0 %v702
        %755 = vmatpush1.msra.mxu0 %v701
        %756 = vmatprep.subr.mxu0 %v704
        %757 = vmatpush1.msra.mxu0 %v703
        %758 = vmatprep.subr.mxu0 %v706
        %759 = vmatpush1.msra.mxu0 %v705
        %760 = vmatprep.subr.mxu0 0.0
        %761 = vmatpush1.msra.mxu0 0.0
        %762 = vmatprep.subr.mxu0 0.0
        %763 = vmatpush1.msra.mxu0 0.0
        %764 = vmatprep.subr.mxu0 0.0
        %765 = vmatpush1.msra.mxu0 0.0
        %766 = vmatprep.subr.mxu0 0.0
        %767 = vmatpush1.msra.mxu0 0.0
        %768 = vmatprep.subr.mxu0 0.0
        %769 = vmatpush1.msra.mxu0 0.0
        %770 = vmatprep.subr.mxu0 0.0
        %771 = vmatpush1.msra.mxu0 0.0
        %772 = vmatprep.subr.mxu0 0.0
        %773 = vmatpush1.msra.mxu0 0.0
        %774 = vmatprep.subr.mxu0 0.0
        %775 = vmatpush1.msra.mxu0 0.0
        %776 = vmatprep.subr.mxu0 0.0
        %777 = vmatpush1.msra.mxu0 0.0
        %778 = vmatprep.subr.mxu0 0.0
        %779 = vmatpush1.msra.mxu0 0.0
        %780 = vmatprep.subr.mxu0 0.0
        %781 = vmatpush1.msra.mxu0 0.0
        %782 = vmatprep.subr.mxu0 0.0
        %783 = vmatpush1.msra.mxu0 0.0
        %784 = vmatprep.mubr.f32.mxu0 %v709
        %785 = vmatmul.mubr.f32.gmra.mrb[0].mxu0 %v659
        %v786 = vpop.f32.mrb[0].mxu0
        %v787 = vadd.f32 0.0, %v786
        %v788 = vpop.f32.mrb[0].mxu0
        %v789 = vadd.f32 0.0, %v788
        %790 = vmatprep.mubr.f32.mxu0 %v712
        %791 = vmatmul.mubr.f32.gmra.mrb[0].mxu0 %v661
        %v792 = vpop.f32.mrb[0].mxu0
        %v793 = vadd.f32 0.0, %v792
        %v794 = vpop.f32.mrb[0].mxu0
        %v795 = vadd.f32 0.0, %v794
        %796 = vmatprep.mubr.f32.mxu0 %v715
        %797 = vmatmul.mubr.f32.gmra.mrb[0].mxu0 %v663
        %v798 = vpop.f32.mrb[0].mxu0
        %v799 = vadd.f32 0.0, %v798
        %v800 = vpop.f32.mrb[0].mxu0
        %v801 = vadd.f32 0.0, %v800
        %802 = vmatprep.mubr.f32.mxu0 %v718
        %803 = vmatmul.mubr.f32.gmra.mrb[0].mxu0 %v665
        %v804 = vpop.f32.mrb[0].mxu0
        %v805 = vadd.f32 0.0, %v804
        %v806 = vpop.f32.mrb[0].mxu0
        %v807 = vadd.f32 0.0, %v806
        %808 = vdwg.mxu0
        %810 = vset.pattern.permute.xlu0 0
        %811 = vperm.xlu0 %810, %v272
        %v812 = vpop.permute.xlu0 %811
        %815 = vset.pattern.permute.xlu0 0
        %816 = vperm.xlu0 %815, %v273
        %v817 = vpop.permute.xlu0 %816
        %820 = vset.pattern.permute.xlu0 0
        %821 = vperm.xlu0 %820, %v274
        %v822 = vpop.permute.xlu0 %821
        %825 = vset.pattern.permute.xlu0 0
        %826 = vperm.xlu0 %825, %v275
        %v827 = vpop.permute.xlu0 %826
        %v829 = vmul.f32 %v812, %v787
        %v830 = vmul.f32 %v812, %v789
        %v831 = vmul.f32 %v817, %v793
        %v832 = vmul.f32 %v817, %v795
        %v833 = vmul.f32 %v822, %v799
        %v834 = vmul.f32 %v822, %v801
        %v835 = vmul.f32 %v827, %v805
        %v836 = vmul.f32 %v827, %v807
        %v837 = vmax.f32 %v787, %v829
        %v838 = vmax.f32 %v789, %v830
        %v839 = vmax.f32 %v793, %v831
        %v840 = vmax.f32 %v795, %v832
        %v841 = vmax.f32 %v799, %v833
        %v842 = vmax.f32 %v801, %v834
        %v843 = vmax.f32 %v805, %v835
        %v844 = vmax.f32 %v807, %v836
        %845 = vst [vmem:[%s271] sm:$0xff] %v837
        %846 = vst [vmem:[%s271 + $0x8] sm:$0xff] %v838
        %847 = vst [vmem:[%s271 + $0x10] sm:$0xff] %v839
        %848 = vst [vmem:[%s271 + $0x18] sm:$0xff] %v840
        %849 = vst [vmem:[%s271 + $0x20] sm:$0xff] %v841
        %850 = vst [vmem:[%s271 + $0x28] sm:$0xff] %v842
        %851 = vst [vmem:[%s271 + $0x30] sm:$0xff] %v843
        %852 = vst [vmem:[%s271 + $0x38] sm:$0xff] %v844
        %v853 = vld [vmem:[%s271] sm:$0xff]
        %v854 = vld [vmem:[%s271 + $0x8] sm:$0xff]
        %v855 = vld [vmem:[%s271 + $0x10] sm:$0xff]
        %v856 = vld [vmem:[%s271 + $0x18] sm:$0xff]
        %857 = vst [vmem:[#allocation2] sm:$0xff] %v853
        %858 = vst [vmem:[#allocation2 + $0x8] sm:$0xff] %v854
        %859 = vst [vmem:[#allocation2 + $0x10] sm:$0xff] %v855
        %860 = vst [vmem:[#allocation2 + $0x18] sm:$0xff] %v856
        %s861 = scalar_lea.vmem [#allocation6], 16
        %v862 = vld [vmem:[%s861] sm:$0xff]
        %v863 = vld [vmem:[%s861 + $0x8] sm:$0xff]
        %v864 = vld [vmem:[%s271 + $0x20] sm:$0xff]
        %v865 = vld [vmem:[%s271 + $0x28] sm:$0xff]
        %v866 = vld [vmem:[%s271 + $0x30] sm:$0xff]
        %v867 = vld [vmem:[%s271 + $0x38] sm:$0xff]
        %v869 = vsel %vm290, %v862, 0
        %v872 = vsel %vm290, %v863, 0
        %874 = vmatprep.subr.mxu0 %v865
        %875 = vmatpush1.msra.mxu0 %v864
        %876 = vmatprep.subr.mxu0 %v867
        %877 = vmatpush1.msra.mxu0 %v866
        %878 = vmatprep.subr.mxu0 0.0
        %879 = vmatpush1.msra.mxu0 0.0
        %880 = vmatprep.subr.mxu0 0.0
        %881 = vmatpush1.msra.mxu0 0.0
        %882 = vmatprep.subr.mxu0 0.0
        %883 = vmatpush1.msra.mxu0 0.0
        %884 = vmatprep.subr.mxu0 0.0
        %885 = vmatpush1.msra.mxu0 0.0
        %886 = vmatprep.subr.mxu0 0.0
        %887 = vmatpush1.msra.mxu0 0.0
        %888 = vmatprep.subr.mxu0 0.0
        %889 = vmatpush1.msra.mxu0 0.0
        %890 = vmatprep.subr.mxu0 0.0
        %891 = vmatpush1.msra.mxu0 0.0
        %892 = vmatprep.subr.mxu0 0.0
        %893 = vmatpush1.msra.mxu0 0.0
        %894 = vmatprep.subr.mxu0 0.0
        %895 = vmatpush1.msra.mxu0 0.0
        %896 = vmatprep.subr.mxu0 0.0
        %897 = vmatpush1.msra.mxu0 0.0
        %898 = vmatprep.subr.mxu0 0.0
        %899 = vmatpush1.msra.mxu0 0.0
        %900 = vmatprep.subr.mxu0 0.0
        %901 = vmatpush1.msra.mxu0 0.0
        %902 = vmatprep.subr.mxu0 0.0
        %903 = vmatpush1.msra.mxu0 0.0
        %904 = vmatprep.subr.mxu0 0.0
        %905 = vmatpush1.msra.mxu0 0.0
        %906 = vmatprep.subr.mxu0 0.0
        %907 = vmatpush1.msra.mxu0 0.0
        %908 = vmatprep.subr.mxu0 0.0
        %909 = vmatpush1.msra.mxu0 0.0
        %910 = vmatprep.subr.mxu0 0.0
        %911 = vmatpush1.msra.mxu0 0.0
        %912 = vmatprep.subr.mxu0 0.0
        %913 = vmatpush1.msra.mxu0 0.0
        %914 = vmatprep.subr.mxu0 0.0
        %915 = vmatpush1.msra.mxu0 0.0
        %916 = vmatprep.subr.mxu0 0.0
        %917 = vmatpush1.msra.mxu0 0.0
        %918 = vmatprep.subr.mxu0 0.0
        %919 = vmatpush1.msra.mxu0 0.0
        %920 = vmatprep.subr.mxu0 0.0
        %921 = vmatpush1.msra.mxu0 0.0
        %922 = vmatprep.subr.mxu0 0.0
        %923 = vmatpush1.msra.mxu0 0.0
        %924 = vmatprep.subr.mxu0 0.0
        %925 = vmatpush1.msra.mxu0 0.0
        %926 = vmatprep.subr.mxu0 0.0
        %927 = vmatpush1.msra.mxu0 0.0
        %928 = vmatprep.subr.mxu0 0.0
        %929 = vmatpush1.msra.mxu0 0.0
        %930 = vmatprep.subr.mxu0 0.0
        %931 = vmatpush1.msra.mxu0 0.0
        %932 = vmatprep.subr.mxu0 0.0
        %933 = vmatpush1.msra.mxu0 0.0
        %934 = vmatprep.subr.mxu0 0.0
        %935 = vmatpush1.msra.mxu0 0.0
        %936 = vmatprep.subr.mxu0 0.0
        %937 = vmatpush1.msra.mxu0 0.0
        %938 = vmatprep.mubr.f32.mxu0 0.0
        %939 = vmatmul.mubr.f32.gmra.mrb[0].mxu0 %v869
        %v940 = vpop.f32.mrb[0].mxu0
        %v941 = vadd.f32 0.0, %v940
        %v942 = vpop.f32.mrb[0].mxu0
        %v943 = vadd.f32 0.0, %v942
        %944 = vmatprep.mubr.f32.mxu0 0.0
        %945 = vmatmul.mubr.f32.gmra.mrb[0].mxu0 %v872
        %v946 = vpop.f32.mrb[0].mxu0
        %v947 = vadd.f32 0.0, %v946
        %v948 = vpop.f32.mrb[0].mxu0
        %v949 = vadd.f32 0.0, %v948
        %950 = vdwg.mxu0
        %v951 = vmul.f32 %v941, 0.1
        %v952 = vmul.f32 %v943, 0.1
        %v953 = vmul.f32 %v947, 0.1
        %v954 = vmul.f32 %v949, 0.1
        %v955 = vmax.f32 %v941, %v951
        %v956 = vmax.f32 %v943, %v952
        %v957 = vmax.f32 %v947, %v953
        %v958 = vmax.f32 %v949, %v954
        %959 = vrot.lane.b32.xlu0 %v955, 17
        %v960 = vpop.permute.xlu0 %959
        %961 = vrot.lane.b32.xlu0 %v957, 17
        %v962 = vpop.permute.xlu0 %961
        %963 = vrot.lane.b32.xlu0 %v956, 17
        %v964 = vpop.permute.xlu0 %963
        %965 = vrot.lane.b32.xlu0 %v958, 17
        %v966 = vpop.permute.xlu0 %965
        %v967 = vsel %vm392, %v960, %v964
        %v968 = vsel %vm392, %v962, %v966
        %v969 = vsel %vm392, %v964, %v960
        %v970 = vsel %vm392, %v966, %v962
        %v971 = vld [vmem:[%s4] sm:$0x3]
        %v973 = vlaneseq
        %v974 = vshrl.u32 %v973, 7
        %v975 = vsub.s32 0, %v974
        %v976 = vrot.slane %v971, %v975
        %v977 = vlaneseq
        %v978 = vshrl.u32 %v977, 7
        %v979 = vsub.s32 1, %v978
        %v980 = vrot.slane %v971, %v979
        %v983 = vmul.f32 %v969, %v976
        %v984 = vmul.f32 %v967, %v980
        %v985 = vmul.f32 %v970, %v976
        %v986 = vmul.f32 %v968, %v980
        %987 = vst [vmem:[#allocation2 + $0x20] sm:$0xff] %v983
        %988 = vst [vmem:[#allocation2 + $0x28] sm:$0xff] %v984
        %989 = vst [vmem:[#allocation2 + $0x30] sm:$0xff] %v985
        %990 = vst [vmem:[#allocation2 + $0x38] sm:$0xff] %v986
        %991 = vrot.lane.b32.xlu0 %v955, 16
        %v992 = vpop.permute.xlu0 %991
        %993 = vrot.lane.b32.xlu0 %v957, 16
        %v994 = vpop.permute.xlu0 %993
        %995 = vrot.lane.b32.xlu0 %v956, 16
        %v996 = vpop.permute.xlu0 %995
        %997 = vrot.lane.b32.xlu0 %v958, 16
        %v998 = vpop.permute.xlu0 %997
        %v999 = vsel %vm425, %v992, %v996
        %v1000 = vsel %vm425, %v994, %v998
        %v1001 = vsel %vm425, %v996, %v992
        %v1002 = vsel %vm425, %v998, %v994
        %v1003 = vld [vmem:[%s430] sm:$0x3]
        %v1005 = vlaneseq
        %v1006 = vshrl.u32 %v1005, 7
        %v1007 = vsub.s32 0, %v1006
        %v1008 = vrot.slane %v1003, %v1007
        %v1009 = vlaneseq
        %v1010 = vshrl.u32 %v1009, 7
        %v1011 = vsub.s32 1, %v1010
        %v1012 = vrot.slane %v1003, %v1011
        %v1015 = vmul.f32 %v1001, %v1008
        %v1016 = vmul.f32 %v999, %v1012
        %v1017 = vmul.f32 %v1002, %v1008
        %v1018 = vmul.f32 %v1000, %v1012
        %1019 = vst [vmem:[#allocation2 + $0x40] sm:$0xff] %v1015
        %1020 = vst [vmem:[#allocation2 + $0x48] sm:$0xff] %v1016
        %1021 = vst [vmem:[#allocation2 + $0x50] sm:$0xff] %v1017
        %1022 = vst [vmem:[#allocation2 + $0x58] sm:$0xff] %v1018
        %1023 = vrot.lane.b32.xlu0 %v955, 15
        %v1024 = vpop.permute.xlu0 %1023
        %1025 = vrot.lane.b32.xlu0 %v957, 15
        %v1026 = vpop.permute.xlu0 %1025
        %1027 = vrot.lane.b32.xlu0 %v956, 15
        %v1028 = vpop.permute.xlu0 %1027
        %1029 = vrot.lane.b32.xlu0 %v958, 15
        %v1030 = vpop.permute.xlu0 %1029
        %v1031 = vsel %vm459, %v1024, %v1028
        %v1032 = vsel %vm459, %v1026, %v1030
        %v1033 = vsel %vm459, %v1028, %v1024
        %v1034 = vsel %vm459, %v1030, %v1026
        %v1035 = vld [vmem:[%s464] sm:$0x3]
        %v1037 = vlaneseq
        %v1038 = vshrl.u32 %v1037, 7
        %v1039 = vsub.s32 0, %v1038
        %v1040 = vrot.slane %v1035, %v1039
        %v1041 = vlaneseq
        %v1042 = vshrl.u32 %v1041, 7
        %v1043 = vsub.s32 1, %v1042
        %v1044 = vrot.slane %v1035, %v1043
        %v1047 = vmul.f32 %v1033, %v1040
        %v1048 = vmul.f32 %v1031, %v1044
        %v1049 = vmul.f32 %v1034, %v1040
        %v1050 = vmul.f32 %v1032, %v1044
        %1051 = vst [vmem:[#allocation2 + $0x60] sm:$0xff] %v1047
        %1052 = vst [vmem:[#allocation2 + $0x68] sm:$0xff] %v1048
        %1053 = vst [vmem:[#allocation2 + $0x70] sm:$0xff] %v1049
        %1054 = vst [vmem:[#allocation2 + $0x78] sm:$0xff] %v1050
        %1055 = vrot.lane.b32.xlu0 %v955, 1
        %v1056 = vpop.permute.xlu0 %1055
        %1057 = vrot.lane.b32.xlu0 %v957, 1
        %v1058 = vpop.permute.xlu0 %1057
        %1059 = vrot.lane.b32.xlu0 %v956, 1
        %v1060 = vpop.permute.xlu0 %1059
        %1061 = vrot.lane.b32.xlu0 %v958, 1
        %v1062 = vpop.permute.xlu0 %1061
        %v1063 = vsel %vm493, %v1056, %v1060
        %v1064 = vsel %vm493, %v1058, %v1062
        %v1065 = vsel %vm493, %v1060, %v1056
        %v1066 = vsel %vm493, %v1062, %v1058
        %v1067 = vld [vmem:[%s498] sm:$0x3]
        %v1069 = vlaneseq
        %v1070 = vshrl.u32 %v1069, 7
        %v1071 = vsub.s32 0, %v1070
        %v1072 = vrot.slane %v1067, %v1071
        %v1073 = vlaneseq
        %v1074 = vshrl.u32 %v1073, 7
        %v1075 = vsub.s32 1, %v1074
        %v1076 = vrot.slane %v1067, %v1075
        %v1079 = vmul.f32 %v1065, %v1072
        %v1080 = vmul.f32 %v1063, %v1076
        %v1081 = vmul.f32 %v1066, %v1072
        %v1082 = vmul.f32 %v1064, %v1076
        %1083 = vst [vmem:[#allocation2 + $0x80] sm:$0xff] %v1079
        %1084 = vst [vmem:[#allocation2 + $0x88] sm:$0xff] %v1080
        %1085 = vst [vmem:[#allocation2 + $0x90] sm:$0xff] %v1081
        %1086 = vst [vmem:[#allocation2 + $0x98] sm:$0xff] %v1082
        %1087 = vst [vmem:[#allocation2 + $0xa0] sm:$0xff] %v955
        %1088 = vst [vmem:[#allocation2 + $0xa8] sm:$0xff] %v956
        %1089 = vst [vmem:[#allocation2 + $0xb0] sm:$0xff] %v957
        %1090 = vst [vmem:[#allocation2 + $0xb8] sm:$0xff] %v958
        %1091 = vrot.lane.b32.xlu0 %v955, 127
        %v1092 = vpop.permute.xlu0 %1091
        %1093 = vrot.lane.b32.xlu0 %v957, 127
        %v1094 = vpop.permute.xlu0 %1093
        %1095 = vrot.lane.b32.xlu0 %v956, 127
        %v1096 = vpop.permute.xlu0 %1095
        %1097 = vrot.lane.b32.xlu0 %v958, 127
        %v1098 = vpop.permute.xlu0 %1097
        %v1099 = vsel %vm531, %v1092, %v1096
        %v1100 = vsel %vm531, %v1094, %v1098
        %v1101 = vsel %vm531, %v1096, %v1092
        %v1102 = vsel %vm531, %v1098, %v1094
        %v1103 = vld [vmem:[%s536] sm:$0x3]
        %v1105 = vlaneseq
        %v1106 = vshrl.u32 %v1105, 7
        %v1107 = vsub.s32 0, %v1106
        %v1108 = vrot.slane %v1103, %v1107
        %v1109 = vlaneseq
        %v1110 = vshrl.u32 %v1109, 7
        %v1111 = vsub.s32 1, %v1110
        %v1112 = vrot.slane %v1103, %v1111
        %v1115 = vmul.f32 %v1099, %v1108
        %v1116 = vmul.f32 %v1101, %v1112
        %v1117 = vmul.f32 %v1100, %v1108
        %v1118 = vmul.f32 %v1102, %v1112
        %1119 = vst [vmem:[#allocation2 + $0xc0] sm:$0xff] %v1115
        %1120 = vst [vmem:[#allocation2 + $0xc8] sm:$0xff] %v1116
        %1121 = vst [vmem:[#allocation2 + $0xd0] sm:$0xff] %v1117
        %1122 = vst [vmem:[#allocation2 + $0xd8] sm:$0xff] %v1118
        %1123 = vrot.lane.b32.xlu0 %v955, 113
        %v1124 = vpop.permute.xlu0 %1123
        %1125 = vrot.lane.b32.xlu0 %v957, 113
        %v1126 = vpop.permute.xlu0 %1125
        %1127 = vrot.lane.b32.xlu0 %v956, 113
        %v1128 = vpop.permute.xlu0 %1127
        %1129 = vrot.lane.b32.xlu0 %v958, 113
        %v1130 = vpop.permute.xlu0 %1129
        %v1131 = vsel %vm565, %v1124, %v1128
        %v1132 = vsel %vm565, %v1126, %v1130
        %v1133 = vsel %vm565, %v1128, %v1124
        %v1134 = vsel %vm565, %v1130, %v1126
        %v1135 = vld [vmem:[%s570] sm:$0x3]
        %v1137 = vlaneseq
        %v1138 = vshrl.u32 %v1137, 7
        %v1139 = vsub.s32 0, %v1138
        %v1140 = vrot.slane %v1135, %v1139
        %v1141 = vlaneseq
        %v1142 = vshrl.u32 %v1141, 7
        %v1143 = vsub.s32 1, %v1142
        %v1144 = vrot.slane %v1135, %v1143
        %v1147 = vmul.f32 %v1131, %v1140
        %v1148 = vmul.f32 %v1133, %v1144
        %v1149 = vmul.f32 %v1132, %v1140
        %v1150 = vmul.f32 %v1134, %v1144
        %1151 = vst [vmem:[#allocation2 + $0xe0] sm:$0xff] %v1147
        %1152 = vst [vmem:[#allocation2 + $0xe8] sm:$0xff] %v1148
        %1153 = vst [vmem:[#allocation2 + $0xf0] sm:$0xff] %v1149
        %1154 = vst [vmem:[#allocation2 + $0xf8] sm:$0xff] %v1150
        %1155 = vrot.lane.b32.xlu0 %v955, 112
        %v1156 = vpop.permute.xlu0 %1155
        %1157 = vrot.lane.b32.xlu0 %v957, 112
        %v1158 = vpop.permute.xlu0 %1157
        %1159 = vrot.lane.b32.xlu0 %v956, 112
        %v1160 = vpop.permute.xlu0 %1159
        %1161 = vrot.lane.b32.xlu0 %v958, 112
        %v1162 = vpop.permute.xlu0 %1161
        %v1163 = vsel %vm599, %v1156, %v1160
        %v1164 = vsel %vm599, %v1158, %v1162
        %v1165 = vsel %vm599, %v1160, %v1156
        %v1166 = vsel %vm599, %v1162, %v1158
        %v1167 = vld [vmem:[%s604] sm:$0x3]
        %v1169 = vlaneseq
        %v1170 = vshrl.u32 %v1169, 7
        %v1171 = vsub.s32 0, %v1170
        %v1172 = vrot.slane %v1167, %v1171
        %v1173 = vlaneseq
        %v1174 = vshrl.u32 %v1173, 7
        %v1175 = vsub.s32 1, %v1174
        %v1176 = vrot.slane %v1167, %v1175
        %v1179 = vmul.f32 %v1163, %v1172
        %v1180 = vmul.f32 %v1165, %v1176
        %v1181 = vmul.f32 %v1164, %v1172
        %v1182 = vmul.f32 %v1166, %v1176
        %1183 = vst [vmem:[#allocation2 + $0x100] sm:$0xff] %v1179
        %1184 = vst [vmem:[#allocation2 + $0x108] sm:$0xff] %v1180
        %1185 = vst [vmem:[#allocation2 + $0x110] sm:$0xff] %v1181
        %1186 = vst [vmem:[#allocation2 + $0x118] sm:$0xff] %v1182
        %1187 = vrot.lane.b32.xlu0 %v955, 111
        %v1188 = vpop.permute.xlu0 %1187
        %1189 = vrot.lane.b32.xlu0 %v957, 111
        %v1190 = vpop.permute.xlu0 %1189
        %1191 = vrot.lane.b32.xlu0 %v956, 111
        %v1192 = vpop.permute.xlu0 %1191
        %1193 = vrot.lane.b32.xlu0 %v958, 111
        %v1194 = vpop.permute.xlu0 %1193
        %v1195 = vsel %vm633, %v1188, %v1192
        %v1196 = vsel %vm633, %v1190, %v1194
        %v1197 = vsel %vm633, %v1192, %v1188
        %v1198 = vsel %vm633, %v1194, %v1190
        %v1199 = vld [vmem:[%s638] sm:$0x3]
        %v1201 = vlaneseq
        %v1202 = vshrl.u32 %v1201, 7
        %v1203 = vsub.s32 0, %v1202
        %v1204 = vrot.slane %v1199, %v1203
        %v1205 = vlaneseq
        %v1206 = vshrl.u32 %v1205, 7
        %v1207 = vsub.s32 1, %v1206
        %v1208 = vrot.slane %v1199, %v1207
        %v1211 = vmul.f32 %v1195, %v1204
        %v1212 = vmul.f32 %v1197, %v1208
        %v1213 = vmul.f32 %v1196, %v1204
        %v1214 = vmul.f32 %v1198, %v1208
        %1215 = vst [vmem:[#allocation2 + $0x120] sm:$0xff] %v1211
        %1216 = vst [vmem:[#allocation2 + $0x128] sm:$0xff] %v1212
        %1217 = vst [vmem:[#allocation2 + $0x130] sm:$0xff] %v1213
        %1218 = vst [vmem:[#allocation2 + $0x138] sm:$0xff] %v1214
        %s1219 = scalar_lea.vmem [#allocation8], 64
        %v1220 = vld [vmem:[%s1219] sm:$0xff]
        %v1221 = vld [vmem:[%s1219 + $0x8] sm:$0xff]
        %v1222 = vld [vmem:[%s1219 + $0x10] sm:$0xff]
        %v1223 = vld [vmem:[%s1219 + $0x18] sm:$0xff]
        %v1224 = vld [vmem:[%s1219 + $0x20] sm:$0xff]
        %v1225 = vld [vmem:[%s1219 + $0x28] sm:$0xff]
        %v1226 = vld [vmem:[%s1219 + $0x30] sm:$0xff]
        %v1227 = vld [vmem:[%s1219 + $0x38] sm:$0xff]
        %v1228 = vld [vmem:[#allocation2] sm:$0xff]
        %v1229 = vld [vmem:[#allocation2 + $0x8] sm:$0xff]
        %v1230 = vld [vmem:[#allocation2 + $0x10] sm:$0xff]
        %v1231 = vld [vmem:[#allocation2 + $0x18] sm:$0xff]
        %v1232 = vld [vmem:[#allocation2 + $0x20] sm:$0xff]
        %v1233 = vld [vmem:[#allocation2 + $0x28] sm:$0xff]
        %v1234 = vld [vmem:[#allocation2 + $0x30] sm:$0xff]
        %v1235 = vld [vmem:[#allocation2 + $0x38] sm:$0xff]
        %v1236 = vld [vmem:[#allocation2 + $0x40] sm:$0xff]
        %v1237 = vld [vmem:[#allocation2 + $0x48] sm:$0xff]
        %v1238 = vld [vmem:[#allocation2 + $0x50] sm:$0xff]
        %v1239 = vld [vmem:[#allocation2 + $0x58] sm:$0xff]
        %v1240 = vld [vmem:[#allocation2 + $0x60] sm:$0xff]
        %v1241 = vld [vmem:[#allocation2 + $0x68] sm:$0xff]
        %v1242 = vld [vmem:[#allocation2 + $0x70] sm:$0xff]
        %v1243 = vld [vmem:[#allocation2 + $0x78] sm:$0xff]
        %v1244 = vld [vmem:[#allocation2 + $0x80] sm:$0xff]
        %v1245 = vld [vmem:[#allocation2 + $0x88] sm:$0xff]
        %v1246 = vld [vmem:[#allocation2 + $0x90] sm:$0xff]
        %v1247 = vld [vmem:[#allocation2 + $0x98] sm:$0xff]
        %v1248 = vld [vmem:[#allocation2 + $0xa0] sm:$0xff]
        %v1249 = vld [vmem:[#allocation2 + $0xa8] sm:$0xff]
        %v1250 = vld [vmem:[#allocation2 + $0xb0] sm:$0xff]
        %v1251 = vld [vmem:[#allocation2 + $0xb8] sm:$0xff]
        %v1252 = vld [vmem:[#allocation2 + $0xc0] sm:$0xff]
        %v1253 = vld [vmem:[#allocation2 + $0xc8] sm:$0xff]
        %v1254 = vld [vmem:[#allocation2 + $0xd0] sm:$0xff]
        %v1255 = vld [vmem:[#allocation2 + $0xd8] sm:$0xff]
        %v1256 = vld [vmem:[#allocation2 + $0xe0] sm:$0xff]
        %v1257 = vld [vmem:[#allocation2 + $0xe8] sm:$0xff]
        %v1258 = vld [vmem:[#allocation2 + $0xf0] sm:$0xff]
        %v1259 = vld [vmem:[#allocation2 + $0xf8] sm:$0xff]
        %v1260 = vld [vmem:[#allocation2 + $0x100] sm:$0xff]
        %v1261 = vld [vmem:[#allocation2 + $0x108] sm:$0xff]
        %v1262 = vld [vmem:[#allocation2 + $0x110] sm:$0xff]
        %v1263 = vld [vmem:[#allocation2 + $0x118] sm:$0xff]
        %v1264 = vld [vmem:[#allocation2 + $0x120] sm:$0xff]
        %v1265 = vld [vmem:[#allocation2 + $0x128] sm:$0xff]
        %v1266 = vld [vmem:[#allocation2 + $0x130] sm:$0xff]
        %v1267 = vld [vmem:[#allocation2 + $0x138] sm:$0xff]
        %v1269 = vsel %vm707, %v1221, 0
        %v1272 = vsel %vm707, %v1223, 0
        %v1275 = vsel %vm707, %v1225, 0
        %v1278 = vsel %vm707, %v1227, 0
        %1280 = vmatprep.subr.mxu0 %v1229
        %1281 = vmatpush1.msra.mxu0 %v1228
        %1282 = vmatprep.subr.mxu0 %v1231
        %1283 = vmatpush1.msra.mxu0 %v1230
        %1284 = vmatprep.subr.mxu0 %v1233
        %1285 = vmatpush1.msra.mxu0 %v1232
        %1286 = vmatprep.subr.mxu0 %v1235
        %1287 = vmatpush1.msra.mxu0 %v1234
        %1288 = vmatprep.subr.mxu0 %v1237
        %1289 = vmatpush1.msra.mxu0 %v1236
        %1290 = vmatprep.subr.mxu0 %v1239
        %1291 = vmatpush1.msra.mxu0 %v1238
        %1292 = vmatprep.subr.mxu0 %v1241
        %1293 = vmatpush1.msra.mxu0 %v1240
        %1294 = vmatprep.subr.mxu0 %v1243
        %1295 = vmatpush1.msra.mxu0 %v1242
        %1296 = vmatprep.subr.mxu0 %v1245
        %1297 = vmatpush1.msra.mxu0 %v1244
        %1298 = vmatprep.subr.mxu0 %v1247
        %1299 = vmatpush1.msra.mxu0 %v1246
        %1300 = vmatprep.subr.mxu0 %v1249
        %1301 = vmatpush1.msra.mxu0 %v1248
        %1302 = vmatprep.subr.mxu0 %v1251
        %1303 = vmatpush1.msra.mxu0 %v1250
        %1304 = vmatprep.subr.mxu0 %v1253
        %1305 = vmatpush1.msra.mxu0 %v1252
        %1306 = vmatprep.subr.mxu0 %v1255
        %1307 = vmatpush1.msra.mxu0 %v1254
        %1308 = vmatprep.subr.mxu0 %v1257
        %1309 = vmatpush1.msra.mxu0 %v1256
        %1310 = vmatprep.subr.mxu0 %v1259
        %1311 = vmatpush1.msra.mxu0 %v1258
        %1312 = vmatprep.subr.mxu0 %v1261
        %1313 = vmatpush1.msra.mxu0 %v1260
        %1314 = vmatprep.subr.mxu0 %v1263
        %1315 = vmatpush1.msra.mxu0 %v1262
        %1316 = vmatprep.subr.mxu0 %v1265
        %1317 = vmatpush1.msra.mxu0 %v1264
        %1318 = vmatprep.subr.mxu0 %v1267
        %1319 = vmatpush1.msra.mxu0 %v1266
        %1320 = vmatprep.subr.mxu0 0.0
        %1321 = vmatpush1.msra.mxu0 0.0
        %1322 = vmatprep.subr.mxu0 0.0
        %1323 = vmatpush1.msra.mxu0 0.0
        %1324 = vmatprep.subr.mxu0 0.0
        %1325 = vmatpush1.msra.mxu0 0.0
        %1326 = vmatprep.subr.mxu0 0.0
        %1327 = vmatpush1.msra.mxu0 0.0
        %1328 = vmatprep.subr.mxu0 0.0
        %1329 = vmatpush1.msra.mxu0 0.0
        %1330 = vmatprep.subr.mxu0 0.0
        %1331 = vmatpush1.msra.mxu0 0.0
        %1332 = vmatprep.subr.mxu0 0.0
        %1333 = vmatpush1.msra.mxu0 0.0
        %1334 = vmatprep.subr.mxu0 0.0
        %1335 = vmatpush1.msra.mxu0 0.0
        %1336 = vmatprep.subr.mxu0 0.0
        %1337 = vmatpush1.msra.mxu0 0.0
        %1338 = vmatprep.subr.mxu0 0.0
        %1339 = vmatpush1.msra.mxu0 0.0
        %1340 = vmatprep.subr.mxu0 0.0
        %1341 = vmatpush1.msra.mxu0 0.0
        %1342 = vmatprep.subr.mxu0 0.0
        %1343 = vmatpush1.msra.mxu0 0.0
        %1344 = vmatprep.mubr.f32.mxu0 %v1269
        %1345 = vmatmul.mubr.f32.gmra.mrb[0].mxu0 %v1220
        %v1346 = vpop.f32.mrb[0].mxu0
        %v1347 = vadd.f32 0.0, %v1346
        %v1348 = vpop.f32.mrb[0].mxu0
        %v1349 = vadd.f32 0.0, %v1348
        %1350 = vmatprep.mubr.f32.mxu0 %v1272
        %1351 = vmatmul.mubr.f32.gmra.mrb[0].mxu0 %v1222
        %v1352 = vpop.f32.mrb[0].mxu0
        %v1353 = vadd.f32 0.0, %v1352
        %v1354 = vpop.f32.mrb[0].mxu0
        %v1355 = vadd.f32 0.0, %v1354
        %1356 = vmatprep.mubr.f32.mxu0 %v1275
        %1357 = vmatmul.mubr.f32.gmra.mrb[0].mxu0 %v1224
        %v1358 = vpop.f32.mrb[0].mxu0
        %v1359 = vadd.f32 0.0, %v1358
        %v1360 = vpop.f32.mrb[0].mxu0
        %v1361 = vadd.f32 0.0, %v1360
        %1362 = vmatprep.mubr.f32.mxu0 %v1278
        %1363 = vmatmul.mubr.f32.gmra.mrb[0].mxu0 %v1226
        %v1364 = vpop.f32.mrb[0].mxu0
        %v1365 = vadd.f32 0.0, %v1364
        %v1366 = vpop.f32.mrb[0].mxu0
        %v1367 = vadd.f32 0.0, %v1366
        %1368 = vdwg.mxu0
        %v1369 = vmul.f32 %v812, %v1347
        %v1370 = vmul.f32 %v812, %v1349
        %v1371 = vmul.f32 %v817, %v1353
        %v1372 = vmul.f32 %v817, %v1355
        %v1373 = vmul.f32 %v822, %v1359
        %v1374 = vmul.f32 %v822, %v1361
        %v1375 = vmul.f32 %v827, %v1365
        %v1376 = vmul.f32 %v827, %v1367
        %v1377 = vmax.f32 %v1347, %v1369
        %v1378 = vmax.f32 %v1349, %v1370
        %v1379 = vmax.f32 %v1353, %v1371
        %v1380 = vmax.f32 %v1355, %v1372
        %v1381 = vmax.f32 %v1359, %v1373
        %v1382 = vmax.f32 %v1361, %v1374
        %v1383 = vmax.f32 %v1365, %v1375
        %v1384 = vmax.f32 %v1367, %v1376
        %1385 = vst [vmem:[%s271] sm:$0xff] %v1377
        %1386 = vst [vmem:[%s271 + $0x8] sm:$0xff] %v1378
        %1387 = vst [vmem:[%s271 + $0x10] sm:$0xff] %v1379
        %1388 = vst [vmem:[%s271 + $0x18] sm:$0xff] %v1380
        %1389 = vst [vmem:[%s271 + $0x20] sm:$0xff] %v1381
        %1390 = vst [vmem:[%s271 + $0x28] sm:$0xff] %v1382
        %1391 = vst [vmem:[%s271 + $0x30] sm:$0xff] %v1383
        %1392 = vst [vmem:[%s271 + $0x38] sm:$0xff] %v1384
        %v1393 = vld [vmem:[%s271] sm:$0xff]
        %v1394 = vld [vmem:[%s271 + $0x8] sm:$0xff]
        %v1395 = vld [vmem:[%s271 + $0x10] sm:$0xff]
        %v1396 = vld [vmem:[%s271 + $0x18] sm:$0xff]
        %1397 = vst [vmem:[#allocation2] sm:$0xff] %v1393
        %1398 = vst [vmem:[#allocation2 + $0x8] sm:$0xff] %v1394
        %1399 = vst [vmem:[#allocation2 + $0x10] sm:$0xff] %v1395
        %1400 = vst [vmem:[#allocation2 + $0x18] sm:$0xff] %v1396
        %s1401 = scalar_lea.vmem [#allocation6], 32
        %v1402 = vld [vmem:[%s1401] sm:$0xff]
        %v1403 = vld [vmem:[%s1401 + $0x8] sm:$0xff]
        %v1404 = vld [vmem:[%s271 + $0x20] sm:$0xff]
        %v1405 = vld [vmem:[%s271 + $0x28] sm:$0xff]
        %v1406 = vld [vmem:[%s271 + $0x30] sm:$0xff]
        %v1407 = vld [vmem:[%s271 + $0x38] sm:$0xff]
        %v1409 = vsel %vm290, %v1402, 0
        %v1412 = vsel %vm290, %v1403, 0
        %1414 = vmatprep.subr.mxu0 %v1405
        %1415 = vmatpush1.msra.mxu0 %v1404
        %1416 = vmatprep.subr.mxu0 %v1407
        %1417 = vmatpush1.msra.mxu0 %v1406
        %1418 = vmatprep.subr.mxu0 0.0
        %1419 = vmatpush1.msra.mxu0 0.0
        %1420 = vmatprep.subr.mxu0 0.0
        %1421 = vmatpush1.msra.mxu0 0.0
        %1422 = vmatprep.subr.mxu0 0.0
        %1423 = vmatpush1.msra.mxu0 0.0
        %1424 = vmatprep.subr.mxu0 0.0
        %1425 = vmatpush1.msra.mxu0 0.0
        %1426 = vmatprep.subr.mxu0 0.0
        %1427 = vmatpush1.msra.mxu0 0.0
        %1428 = vmatprep.subr.mxu0 0.0
        %1429 = vmatpush1.msra.mxu0 0.0
        %1430 = vmatprep.subr.mxu0 0.0
        %1431 = vmatpush1.msra.mxu0 0.0
        %1432 = vmatprep.subr.mxu0 0.0
        %1433 = vmatpush1.msra.mxu0 0.0
        %1434 = vmatprep.subr.mxu0 0.0
        %1435 = vmatpush1.msra.mxu0 0.0
        %1436 = vmatprep.subr.mxu0 0.0
        %1437 = vmatpush1.msra.mxu0 0.0
        %1438 = vmatprep.subr.mxu0 0.0
        %1439 = vmatpush1.msra.mxu0 0.0
        %1440 = vmatprep.subr.mxu0 0.0
        %1441 = vmatpush1.msra.mxu0 0.0
        %1442 = vmatprep.subr.mxu0 0.0
        %1443 = vmatpush1.msra.mxu0 0.0
        %1444 = vmatprep.subr.mxu0 0.0
        %1445 = vmatpush1.msra.mxu0 0.0
        %1446 = vmatprep.subr.mxu0 0.0
        %1447 = vmatpush1.msra.mxu0 0.0
        %1448 = vmatprep.subr.mxu0 0.0
        %1449 = vmatpush1.msra.mxu0 0.0
        %1450 = vmatprep.subr.mxu0 0.0
        %1451 = vmatpush1.msra.mxu0 0.0
        %1452 = vmatprep.subr.mxu0 0.0
        %1453 = vmatpush1.msra.mxu0 0.0
        %1454 = vmatprep.subr.mxu0 0.0
        %1455 = vmatpush1.msra.mxu0 0.0
        %1456 = vmatprep.subr.mxu0 0.0
        %1457 = vmatpush1.msra.mxu0 0.0
        %1458 = vmatprep.subr.mxu0 0.0
        %1459 = vmatpush1.msra.mxu0 0.0
        %1460 = vmatprep.subr.mxu0 0.0
        %1461 = vmatpush1.msra.mxu0 0.0
        %1462 = vmatprep.subr.mxu0 0.0
        %1463 = vmatpush1.msra.mxu0 0.0
        %1464 = vmatprep.subr.mxu0 0.0
        %1465 = vmatpush1.msra.mxu0 0.0
        %1466 = vmatprep.subr.mxu0 0.0
        %1467 = vmatpush1.msra.mxu0 0.0
        %1468 = vmatprep.subr.mxu0 0.0
        %1469 = vmatpush1.msra.mxu0 0.0
        %1470 = vmatprep.subr.mxu0 0.0
        %1471 = vmatpush1.msra.mxu0 0.0
        %1472 = vmatprep.subr.mxu0 0.0
        %1473 = vmatpush1.msra.mxu0 0.0
        %1474 = vmatprep.subr.mxu0 0.0
        %1475 = vmatpush1.msra.mxu0 0.0
        %1476 = vmatprep.subr.mxu0 0.0
        %1477 = vmatpush1.msra.mxu0 0.0
        %1478 = vmatprep.mubr.f32.mxu0 0.0
        %1479 = vmatmul.mubr.f32.gmra.mrb[0].mxu0 %v1409
        %v1480 = vpop.f32.mrb[0].mxu0
        %v1481 = vadd.f32 0.0, %v1480
        %v1482 = vpop.f32.mrb[0].mxu0
        %v1483 = vadd.f32 0.0, %v1482
        %1484 = vmatprep.mubr.f32.mxu0 0.0
        %1485 = vmatmul.mubr.f32.gmra.mrb[0].mxu0 %v1412
        %v1486 = vpop.f32.mrb[0].mxu0
        %v1487 = vadd.f32 0.0, %v1486
        %v1488 = vpop.f32.mrb[0].mxu0
        %v1489 = vadd.f32 0.0, %v1488
        %1490 = vdwg.mxu0
        %v1491 = vmul.f32 %v1481, 0.1
        %v1492 = vmul.f32 %v1483, 0.1
        %v1493 = vmul.f32 %v1487, 0.1
        %v1494 = vmul.f32 %v1489, 0.1
        %v1495 = vmax.f32 %v1481, %v1491
        %v1496 = vmax.f32 %v1483, %v1492
        %v1497 = vmax.f32 %v1487, %v1493
        %v1498 = vmax.f32 %v1489, %v1494
        %1499 = vrot.lane.b32.xlu0 %v1495, 17
        %v1500 = vpop.permute.xlu0 %1499
        %1501 = vrot.lane.b32.xlu0 %v1497, 17
        %v1502 = vpop.permute.xlu0 %1501
        %1503 = vrot.lane.b32.xlu0 %v1496, 17
        %v1504 = vpop.permute.xlu0 %1503
        %1505 = vrot.lane.b32.xlu0 %v1498, 17
        %v1506 = vpop.permute.xlu0 %1505
        %v1507 = vsel %vm392, %v1500, %v1504
        %v1508 = vsel %vm392, %v1502, %v1506
        %v1509 = vsel %vm392, %v1504, %v1500
        %v1510 = vsel %vm392, %v1506, %v1502
        %v1511 = vld [vmem:[%s4] sm:$0x3]
        %v1513 = vlaneseq
        %v1514 = vshrl.u32 %v1513, 7
        %v1515 = vsub.s32 0, %v1514
        %v1516 = vrot.slane %v1511, %v1515
        %v1517 = vlaneseq
        %v1518 = vshrl.u32 %v1517, 7
        %v1519 = vsub.s32 1, %v1518
        %v1520 = vrot.slane %v1511, %v1519
        %v1523 = vmul.f32 %v1509, %v1516
        %v1524 = vmul.f32 %v1507, %v1520
        %v1525 = vmul.f32 %v1510, %v1516
        %v1526 = vmul.f32 %v1508, %v1520
        %1527 = vst [vmem:[#allocation2 + $0x20] sm:$0xff] %v1523
        %1528 = vst [vmem:[#allocation2 + $0x28] sm:$0xff] %v1524
        %1529 = vst [vmem:[#allocation2 + $0x30] sm:$0xff] %v1525
        %1530 = vst [vmem:[#allocation2 + $0x38] sm:$0xff] %v1526
        %1531 = vrot.lane.b32.xlu0 %v1495, 16
        %v1532 = vpop.permute.xlu0 %1531
        %1533 = vrot.lane.b32.xlu0 %v1497, 16
        %v1534 = vpop.permute.xlu0 %1533
        %1535 = vrot.lane.b32.xlu0 %v1496, 16
        %v1536 = vpop.permute.xlu0 %1535
        %1537 = vrot.lane.b32.xlu0 %v1498, 16
        %v1538 = vpop.permute.xlu0 %1537
        %v1539 = vsel %vm425, %v1532, %v1536
        %v1540 = vsel %vm425, %v1534, %v1538
        %v1541 = vsel %vm425, %v1536, %v1532
        %v1542 = vsel %vm425, %v1538, %v1534
        %v1543 = vld [vmem:[%s430] sm:$0x3]
        %v1545 = vlaneseq
        %v1546 = vshrl.u32 %v1545, 7
        %v1547 = vsub.s32 0, %v1546
        %v1548 = vrot.slane %v1543, %v1547
        %v1549 = vlaneseq
        %v1550 = vshrl.u32 %v1549, 7
        %v1551 = vsub.s32 1, %v1550
        %v1552 = vrot.slane %v1543, %v1551
        %v1555 = vmul.f32 %v1541, %v1548
        %v1556 = vmul.f32 %v1539, %v1552
        %v1557 = vmul.f32 %v1542, %v1548
        %v1558 = vmul.f32 %v1540, %v1552
        %1559 = vst [vmem:[#allocation2 + $0x40] sm:$0xff] %v1555
        %1560 = vst [vmem:[#allocation2 + $0x48] sm:$0xff] %v1556
        %1561 = vst [vmem:[#allocation2 + $0x50] sm:$0xff] %v1557
        %1562 = vst [vmem:[#allocation2 + $0x58] sm:$0xff] %v1558
        %1563 = vrot.lane.b32.xlu0 %v1495, 15
        %v1564 = vpop.permute.xlu0 %1563
        %1565 = vrot.lane.b32.xlu0 %v1497, 15
        %v1566 = vpop.permute.xlu0 %1565
        %1567 = vrot.lane.b32.xlu0 %v1496, 15
        %v1568 = vpop.permute.xlu0 %1567
        %1569 = vrot.lane.b32.xlu0 %v1498, 15
        %v1570 = vpop.permute.xlu0 %1569
        %v1571 = vsel %vm459, %v1564, %v1568
        %v1572 = vsel %vm459, %v1566, %v1570
        %v1573 = vsel %vm459, %v1568, %v1564
        %v1574 = vsel %vm459, %v1570, %v1566
        %v1575 = vld [vmem:[%s464] sm:$0x3]
        %v1577 = vlaneseq
        %v1578 = vshrl.u32 %v1577, 7
        %v1579 = vsub.s32 0, %v1578
        %v1580 = vrot.slane %v1575, %v1579
        %v1581 = vlaneseq
        %v1582 = vshrl.u32 %v1581, 7
        %v1583 = vsub.s32 1, %v1582
        %v1584 = vrot.slane %v1575, %v1583
        %v1587 = vmul.f32 %v1573, %v1580
        %v1588 = vmul.f32 %v1571, %v1584
        %v1589 = vmul.f32 %v1574, %v1580
        %v1590 = vmul.f32 %v1572, %v1584
        %1591 = vst [vmem:[#allocation2 + $0x60] sm:$0xff] %v1587
        %1592 = vst [vmem:[#allocation2 + $0x68] sm:$0xff] %v1588
        %1593 = vst [vmem:[#allocation2 + $0x70] sm:$0xff] %v1589
        %1594 = vst [vmem:[#allocation2 + $0x78] sm:$0xff] %v1590
        %1595 = vrot.lane.b32.xlu0 %v1495, 1
        %v1596 = vpop.permute.xlu0 %1595
        %1597 = vrot.lane.b32.xlu0 %v1497, 1
        %v1598 = vpop.permute.xlu0 %1597
        %1599 = vrot.lane.b32.xlu0 %v1496, 1
        %v1600 = vpop.permute.xlu0 %1599
        %1601 = vrot.lane.b32.xlu0 %v1498, 1
        %v1602 = vpop.permute.xlu0 %1601
        %v1603 = vsel %vm493, %v1596, %v1600
        %v1604 = vsel %vm493, %v1598, %v1602
        %v1605 = vsel %vm493, %v1600, %v1596
        %v1606 = vsel %vm493, %v1602, %v1598
        %v1607 = vld [vmem:[%s498] sm:$0x3]
        %v1609 = vlaneseq
        %v1610 = vshrl.u32 %v1609, 7
        %v1611 = vsub.s32 0, %v1610
        %v1612 = vrot.slane %v1607, %v1611
        %v1613 = vlaneseq
        %v1614 = vshrl.u32 %v1613, 7
        %v1615 = vsub.s32 1, %v1614
        %v1616 = vrot.slane %v1607, %v1615
        %v1619 = vmul.f32 %v1605, %v1612
        %v1620 = vmul.f32 %v1603, %v1616
        %v1621 = vmul.f32 %v1606, %v1612
        %v1622 = vmul.f32 %v1604, %v1616
        %1623 = vst [vmem:[#allocation2 + $0x80] sm:$0xff] %v1619
        %1624 = vst [vmem:[#allocation2 + $0x88] sm:$0xff] %v1620
        %1625 = vst [vmem:[#allocation2 + $0x90] sm:$0xff] %v1621
        %1626 = vst [vmem:[#allocation2 + $0x98] sm:$0xff] %v1622
        %1627 = vst [vmem:[#allocation2 + $0xa0] sm:$0xff] %v1495
        %1628 = vst [vmem:[#allocation2 + $0xa8] sm:$0xff] %v1496
        %1629 = vst [vmem:[#allocation2 + $0xb0] sm:$0xff] %v1497
        %1630 = vst [vmem:[#allocation2 + $0xb8] sm:$0xff] %v1498
        %1631 = vrot.lane.b32.xlu0 %v1495, 127
        %v1632 = vpop.permute.xlu0 %1631
        %1633 = vrot.lane.b32.xlu0 %v1497, 127
        %v1634 = vpop.permute.xlu0 %1633
        %1635 = vrot.lane.b32.xlu0 %v1496, 127
        %v1636 = vpop.permute.xlu0 %1635
        %1637 = vrot.lane.b32.xlu0 %v1498, 127
        %v1638 = vpop.permute.xlu0 %1637
        %v1639 = vsel %vm531, %v1632, %v1636
        %v1640 = vsel %vm531, %v1634, %v1638
        %v1641 = vsel %vm531, %v1636, %v1632
        %v1642 = vsel %vm531, %v1638, %v1634
        %v1643 = vld [vmem:[%s536] sm:$0x3]
        %v1645 = vlaneseq
        %v1646 = vshrl.u32 %v1645, 7
        %v1647 = vsub.s32 0, %v1646
        %v1648 = vrot.slane %v1643, %v1647
        %v1649 = vlaneseq
        %v1650 = vshrl.u32 %v1649, 7
        %v1651 = vsub.s32 1, %v1650
        %v1652 = vrot.slane %v1643, %v1651
        %v1655 = vmul.f32 %v1639, %v1648
        %v1656 = vmul.f32 %v1641, %v1652
        %v1657 = vmul.f32 %v1640, %v1648
        %v1658 = vmul.f32 %v1642, %v1652
        %1659 = vst [vmem:[#allocation2 + $0xc0] sm:$0xff] %v1655
        %1660 = vst [vmem:[#allocation2 + $0xc8] sm:$0xff] %v1656
        %1661 = vst [vmem:[#allocation2 + $0xd0] sm:$0xff] %v1657
        %1662 = vst [vmem:[#allocation2 + $0xd8] sm:$0xff] %v1658
        %1663 = vrot.lane.b32.xlu0 %v1495, 113
        %v1664 = vpop.permute.xlu0 %1663
        %1665 = vrot.lane.b32.xlu0 %v1497, 113
        %v1666 = vpop.permute.xlu0 %1665
        %1667 = vrot.lane.b32.xlu0 %v1496, 113
        %v1668 = vpop.permute.xlu0 %1667
        %1669 = vrot.lane.b32.xlu0 %v1498, 113
        %v1670 = vpop.permute.xlu0 %1669
        %v1671 = vsel %vm565, %v1664, %v1668
        %v1672 = vsel %vm565, %v1666, %v1670
        %v1673 = vsel %vm565, %v1668, %v1664
        %v1674 = vsel %vm565, %v1670, %v1666
        %v1675 = vld [vmem:[%s570] sm:$0x3]
        %v1677 = vlaneseq
        %v1678 = vshrl.u32 %v1677, 7
        %v1679 = vsub.s32 0, %v1678
        %v1680 = vrot.slane %v1675, %v1679
        %v1681 = vlaneseq
        %v1682 = vshrl.u32 %v1681, 7
        %v1683 = vsub.s32 1, %v1682
        %v1684 = vrot.slane %v1675, %v1683
        %v1687 = vmul.f32 %v1671, %v1680
        %v1688 = vmul.f32 %v1673, %v1684
        %v1689 = vmul.f32 %v1672, %v1680
        %v1690 = vmul.f32 %v1674, %v1684
        %1691 = vst [vmem:[#allocation2 + $0xe0] sm:$0xff] %v1687
        %1692 = vst [vmem:[#allocation2 + $0xe8] sm:$0xff] %v1688
        %1693 = vst [vmem:[#allocation2 + $0xf0] sm:$0xff] %v1689
        %1694 = vst [vmem:[#allocation2 + $0xf8] sm:$0xff] %v1690
        %1695 = vrot.lane.b32.xlu0 %v1495, 112
        %v1696 = vpop.permute.xlu0 %1695
        %1697 = vrot.lane.b32.xlu0 %v1497, 112
        %v1698 = vpop.permute.xlu0 %1697
        %1699 = vrot.lane.b32.xlu0 %v1496, 112
        %v1700 = vpop.permute.xlu0 %1699
        %1701 = vrot.lane.b32.xlu0 %v1498, 112
        %v1702 = vpop.permute.xlu0 %1701
        %v1703 = vsel %vm599, %v1696, %v1700
        %v1704 = vsel %vm599, %v1698, %v1702
        %v1705 = vsel %vm599, %v1700, %v1696
        %v1706 = vsel %vm599, %v1702, %v1698
        %v1707 = vld [vmem:[%s604] sm:$0x3]
        %v1709 = vlaneseq
        %v1710 = vshrl.u32 %v1709, 7
        %v1711 = vsub.s32 0, %v1710
        %v1712 = vrot.slane %v1707, %v1711
        %v1713 = vlaneseq
        %v1714 = vshrl.u32 %v1713, 7
        %v1715 = vsub.s32 1, %v1714
        %v1716 = vrot.slane %v1707, %v1715
        %v1719 = vmul.f32 %v1703, %v1712
        %v1720 = vmul.f32 %v1705, %v1716
        %v1721 = vmul.f32 %v1704, %v1712
        %v1722 = vmul.f32 %v1706, %v1716
        %1723 = vst [vmem:[#allocation2 + $0x100] sm:$0xff] %v1719
        %1724 = vst [vmem:[#allocation2 + $0x108] sm:$0xff] %v1720
        %1725 = vst [vmem:[#allocation2 + $0x110] sm:$0xff] %v1721
        %1726 = vst [vmem:[#allocation2 + $0x118] sm:$0xff] %v1722
        %1727 = vrot.lane.b32.xlu0 %v1495, 111
        %v1728 = vpop.permute.xlu0 %1727
        %1729 = vrot.lane.b32.xlu0 %v1497, 111
        %v1730 = vpop.permute.xlu0 %1729
        %1731 = vrot.lane.b32.xlu0 %v1496, 111
        %v1732 = vpop.permute.xlu0 %1731
        %1733 = vrot.lane.b32.xlu0 %v1498, 111
        %v1734 = vpop.permute.xlu0 %1733
        %v1735 = vsel %vm633, %v1728, %v1732
        %v1736 = vsel %vm633, %v1730, %v1734
        %v1737 = vsel %vm633, %v1732, %v1728
        %v1738 = vsel %vm633, %v1734, %v1730
        %v1739 = vld [vmem:[%s638] sm:$0x3]
        %v1741 = vlaneseq
        %v1742 = vshrl.u32 %v1741, 7
        %v1743 = vsub.s32 0, %v1742
        %v1744 = vrot.slane %v1739, %v1743
        %v1745 = vlaneseq
        %v1746 = vshrl.u32 %v1745, 7
        %v1747 = vsub.s32 1, %v1746
        %v1748 = vrot.slane %v1739, %v1747
        %v1751 = vmul.f32 %v1735, %v1744
        %v1752 = vmul.f32 %v1737, %v1748
        %v1753 = vmul.f32 %v1736, %v1744
        %v1754 = vmul.f32 %v1738, %v1748
        %1755 = vst [vmem:[#allocation2 + $0x120] sm:$0xff] %v1751
        %1756 = vst [vmem:[#allocation2 + $0x128] sm:$0xff] %v1752
        %1757 = vst [vmem:[#allocation2 + $0x130] sm:$0xff] %v1753
        %1758 = vst [vmem:[#allocation2 + $0x138] sm:$0xff] %v1754
        %s1759 = scalar_lea.vmem [#allocation8], 128
        %v1760 = vld [vmem:[%s1759] sm:$0xff]
        %v1761 = vld [vmem:[%s1759 + $0x8] sm:$0xff]
        %v1762 = vld [vmem:[%s1759 + $0x10] sm:$0xff]
        %v1763 = vld [vmem:[%s1759 + $0x18] sm:$0xff]
        %v1764 = vld [vmem:[%s1759 + $0x20] sm:$0xff]
        %v1765 = vld [vmem:[%s1759 + $0x28] sm:$0xff]
        %v1766 = vld [vmem:[%s1759 + $0x30] sm:$0xff]
        %v1767 = vld [vmem:[%s1759 + $0x38] sm:$0xff]
        %v1768 = vld [vmem:[#allocation2] sm:$0xff]
        %v1769 = vld [vmem:[#allocation2 + $0x8] sm:$0xff]
        %v1770 = vld [vmem:[#allocation2 + $0x10] sm:$0xff]
        %v1771 = vld [vmem:[#allocation2 + $0x18] sm:$0xff]
        %v1772 = vld [vmem:[#allocation2 + $0x20] sm:$0xff]
        %v1773 = vld [vmem:[#allocation2 + $0x28] sm:$0xff]
        %v1774 = vld [vmem:[#allocation2 + $0x30] sm:$0xff]
        %v1775 = vld [vmem:[#allocation2 + $0x38] sm:$0xff]
        %v1776 = vld [vmem:[#allocation2 + $0x40] sm:$0xff]
        %v1777 = vld [vmem:[#allocation2 + $0x48] sm:$0xff]
        %v1778 = vld [vmem:[#allocation2 + $0x50] sm:$0xff]
        %v1779 = vld [vmem:[#allocation2 + $0x58] sm:$0xff]
        %v1780 = vld [vmem:[#allocation2 + $0x60] sm:$0xff]
        %v1781 = vld [vmem:[#allocation2 + $0x68] sm:$0xff]
        %v1782 = vld [vmem:[#allocation2 + $0x70] sm:$0xff]
        %v1783 = vld [vmem:[#allocation2 + $0x78] sm:$0xff]
        %v1784 = vld [vmem:[#allocation2 + $0x80] sm:$0xff]
        %v1785 = vld [vmem:[#allocation2 + $0x88] sm:$0xff]
        %v1786 = vld [vmem:[#allocation2 + $0x90] sm:$0xff]
        %v1787 = vld [vmem:[#allocation2 + $0x98] sm:$0xff]
        %v1788 = vld [vmem:[#allocation2 + $0xa0] sm:$0xff]
        %v1789 = vld [vmem:[#allocation2 + $0xa8] sm:$0xff]
        %v1790 = vld [vmem:[#allocation2 + $0xb0] sm:$0xff]
        %v1791 = vld [vmem:[#allocation2 + $0xb8] sm:$0xff]
        %v1792 = vld [vmem:[#allocation2 + $0xc0] sm:$0xff]
        %v1793 = vld [vmem:[#allocation2 + $0xc8] sm:$0xff]
        %v1794 = vld [vmem:[#allocation2 + $0xd0] sm:$0xff]
        %v1795 = vld [vmem:[#allocation2 + $0xd8] sm:$0xff]
        %v1796 = vld [vmem:[#allocation2 + $0xe0] sm:$0xff]
        %v1797 = vld [vmem:[#allocation2 + $0xe8] sm:$0xff]
        %v1798 = vld [vmem:[#allocation2 + $0xf0] sm:$0xff]
        %v1799 = vld [vmem:[#allocation2 + $0xf8] sm:$0xff]
        %v1800 = vld [vmem:[#allocation2 + $0x100] sm:$0xff]
        %v1801 = vld [vmem:[#allocation2 + $0x108] sm:$0xff]
        %v1802 = vld [vmem:[#allocation2 + $0x110] sm:$0xff]
        %v1803 = vld [vmem:[#allocation2 + $0x118] sm:$0xff]
        %v1804 = vld [vmem:[#allocation2 + $0x120] sm:$0xff]
        %v1805 = vld [vmem:[#allocation2 + $0x128] sm:$0xff]
        %v1806 = vld [vmem:[#allocation2 + $0x130] sm:$0xff]
        %v1807 = vld [vmem:[#allocation2 + $0x138] sm:$0xff]
        %v1809 = vsel %vm707, %v1761, 0
        %v1812 = vsel %vm707, %v1763, 0
        %v1815 = vsel %vm707, %v1765, 0
        %v1818 = vsel %vm707, %v1767, 0
        %1820 = vmatprep.subr.mxu0 %v1769
        %1821 = vmatpush1.msra.mxu0 %v1768
        %1822 = vmatprep.subr.mxu0 %v1771
        %1823 = vmatpush1.msra.mxu0 %v1770
        %1824 = vmatprep.subr.mxu0 %v1773
        %1825 = vmatpush1.msra.mxu0 %v1772
        %1826 = vmatprep.subr.mxu0 %v1775
        %1827 = vmatpush1.msra.mxu0 %v1774
        %1828 = vmatprep.subr.mxu0 %v1777
        %1829 = vmatpush1.msra.mxu0 %v1776
        %1830 = vmatprep.subr.mxu0 %v1779
        %1831 = vmatpush1.msra.mxu0 %v1778
        %1832 = vmatprep.subr.mxu0 %v1781
        %1833 = vmatpush1.msra.mxu0 %v1780
        %1834 = vmatprep.subr.mxu0 %v1783
        %1835 = vmatpush1.msra.mxu0 %v1782
        %1836 = vmatprep.subr.mxu0 %v1785
        %1837 = vmatpush1.msra.mxu0 %v1784
        %1838 = vmatprep.subr.mxu0 %v1787
        %1839 = vmatpush1.msra.mxu0 %v1786
        %1840 = vmatprep.subr.mxu0 %v1789
        %1841 = vmatpush1.msra.mxu0 %v1788
        %1842 = vmatprep.subr.mxu0 %v1791
        %1843 = vmatpush1.msra.mxu0 %v1790
        %1844 = vmatprep.subr.mxu0 %v1793
        %1845 = vmatpush1.msra.mxu0 %v1792
        %1846 = vmatprep.subr.mxu0 %v1795
        %1847 = vmatpush1.msra.mxu0 %v1794
        %1848 = vmatprep.subr.mxu0 %v1797
        %1849 = vmatpush1.msra.mxu0 %v1796
        %1850 = vmatprep.subr.mxu0 %v1799
        %1851 = vmatpush1.msra.mxu0 %v1798
        %1852 = vmatprep.subr.mxu0 %v1801
        %1853 = vmatpush1.msra.mxu0 %v1800
        %1854 = vmatprep.subr.mxu0 %v1803
        %1855 = vmatpush1.msra.mxu0 %v1802
        %1856 = vmatprep.subr.mxu0 %v1805
        %1857 = vmatpush1.msra.mxu0 %v1804
        %1858 = vmatprep.subr.mxu0 %v1807
        %1859 = vmatpush1.msra.mxu0 %v1806
        %1860 = vmatprep.subr.mxu0 0.0
        %1861 = vmatpush1.msra.mxu0 0.0
        %1862 = vmatprep.subr.mxu0 0.0
        %1863 = vmatpush1.msra.mxu0 0.0
        %1864 = vmatprep.subr.mxu0 0.0
        %1865 = vmatpush1.msra.mxu0 0.0
        %1866 = vmatprep.subr.mxu0 0.0
        %1867 = vmatpush1.msra.mxu0 0.0
        %1868 = vmatprep.subr.mxu0 0.0
        %1869 = vmatpush1.msra.mxu0 0.0
        %1870 = vmatprep.subr.mxu0 0.0
        %1871 = vmatpush1.msra.mxu0 0.0
        %1872 = vmatprep.subr.mxu0 0.0
        %1873 = vmatpush1.msra.mxu0 0.0
        %1874 = vmatprep.subr.mxu0 0.0
        %1875 = vmatpush1.msra.mxu0 0.0
        %1876 = vmatprep.subr.mxu0 0.0
        %1877 = vmatpush1.msra.mxu0 0.0
        %1878 = vmatprep.subr.mxu0 0.0
        %1879 = vmatpush1.msra.mxu0 0.0
        %1880 = vmatprep.subr.mxu0 0.0
        %1881 = vmatpush1.msra.mxu0 0.0
        %1882 = vmatprep.subr.mxu0 0.0
        %1883 = vmatpush1.msra.mxu0 0.0
        %1884 = vmatprep.mubr.f32.mxu0 %v1809
        %1885 = vmatmul.mubr.f32.gmra.mrb[0].mxu0 %v1760
        %v1886 = vpop.f32.mrb[0].mxu0
        %v1887 = vadd.f32 0.0, %v1886
        %v1888 = vpop.f32.mrb[0].mxu0
        %v1889 = vadd.f32 0.0, %v1888
        %1890 = vmatprep.mubr.f32.mxu0 %v1812
        %1891 = vmatmul.mubr.f32.gmra.mrb[0].mxu0 %v1762
        %v1892 = vpop.f32.mrb[0].mxu0
        %v1893 = vadd.f32 0.0, %v1892
        %v1894 = vpop.f32.mrb[0].mxu0
        %v1895 = vadd.f32 0.0, %v1894
        %1896 = vmatprep.mubr.f32.mxu0 %v1815
        %1897 = vmatmul.mubr.f32.gmra.mrb[0].mxu0 %v1764
        %v1898 = vpop.f32.mrb[0].mxu0
        %v1899 = vadd.f32 0.0, %v1898
        %v1900 = vpop.f32.mrb[0].mxu0
        %v1901 = vadd.f32 0.0, %v1900
        %1902 = vmatprep.mubr.f32.mxu0 %v1818
        %1903 = vmatmul.mubr.f32.gmra.mrb[0].mxu0 %v1766
        %v1904 = vpop.f32.mrb[0].mxu0
        %v1905 = vadd.f32 0.0, %v1904
        %v1906 = vpop.f32.mrb[0].mxu0
        %v1907 = vadd.f32 0.0, %v1906
        %1908 = vdwg.mxu0
        %v1909 = vmul.f32 %v812, %v1887
        %v1910 = vmul.f32 %v812, %v1889
        %v1911 = vmul.f32 %v817, %v1893
        %v1912 = vmul.f32 %v817, %v1895
        %v1913 = vmul.f32 %v822, %v1899
        %v1914 = vmul.f32 %v822, %v1901
        %v1915 = vmul.f32 %v827, %v1905
        %v1916 = vmul.f32 %v827, %v1907
        %v1917 = vmax.f32 %v1887, %v1909
        %v1918 = vmax.f32 %v1889, %v1910
        %v1919 = vmax.f32 %v1893, %v1911
        %v1920 = vmax.f32 %v1895, %v1912
        %v1921 = vmax.f32 %v1899, %v1913
        %v1922 = vmax.f32 %v1901, %v1914
        %v1923 = vmax.f32 %v1905, %v1915
        %v1924 = vmax.f32 %v1907, %v1916
        %1925 = vst [vmem:[%s271] sm:$0xff] %v1917
        %1926 = vst [vmem:[%s271 + $0x8] sm:$0xff] %v1918
        %1927 = vst [vmem:[%s271 + $0x10] sm:$0xff] %v1919
        %1928 = vst [vmem:[%s271 + $0x18] sm:$0xff] %v1920
        %1929 = vst [vmem:[%s271 + $0x20] sm:$0xff] %v1921
        %1930 = vst [vmem:[%s271 + $0x28] sm:$0xff] %v1922
        %1931 = vst [vmem:[%s271 + $0x30] sm:$0xff] %v1923
        %1932 = vst [vmem:[%s271 + $0x38] sm:$0xff] %v1924
        %s1933 = sand.u32 %s141, 1
        %s1934 = scalar_lea.sflag [#allocation5], %s1933
        %s1935 = sand.u32 %s141, 1
        %s1936 = smul.addr %s1935, 64
        %s1937 = scalar_lea.vmem [#allocation9], %s1936
        // Predicated region
        $region53: #{tpu_custom_call.1} parent=39 // pred_check
          %p1938 = pneg %p151
        $region54: #{tpu_custom_call.1} parent=39 // pred_check_branch
          %1940 = sbr.rel (%p1938) target = $region56
        $region55: #{tpu_custom_call.1} parent=39 // pred_region
          %s1942 = ssub.s32 1024, 1024
          %1943 = vsyncadd %s1934, %s1942
          %s1944 = smul.addr %s23, 8
          %s1945 = smul.addr %s1944, 128
          %s1946 = scalar_lea.hbm %s5, %s1945
          %s1947 = sshll.u32 %s1937, 4
          %s1948 = int_to_ptr.vmem [resolvable:$true] %s1947
          %1953 = dma.vmem_to_hbm [thread:$0]  %s1948, 1024, %s1946, %s1934, 256, 256, 16
        $region56: #{tpu_custom_call.1} parent=39 // pred_fallthru
          _
      $region40: #{tpu_custom_call.1} parent=5 // pred_fallthru
        _
      %p1954 = scmp.le.s32.totalorder 2, %s18
      // Predicated region
      $region57: #{tpu_custom_call.1} parent=5 // pred_check
        %p1955 = pneg %p1954
      $region58: #{tpu_custom_call.1} parent=5 // pred_check_branch
        %1957 = sbr.rel (%p1955) target = $region60
      $region59: #{tpu_custom_call.1} parent=5 // pred_region
        %s1958 = ssub.s32 %s18, 2
        // Predicated region
        $region61: #{tpu_custom_call.1} parent=59 // pred_check
          %p1959 = pneg %p157
        $region62: #{tpu_custom_call.1} parent=59 // pred_check_branch
          %1961 = sbr.rel (%p1959) target = $region64
        $region63: #{tpu_custom_call.1} parent=59 // pred_region
          %s1962 = sand.u32 %s142, 1
          %s1963 = scalar_lea.sflag [#allocation5], %s1962
          %s1964 = sand.u32 %s142, 1
          %s1965 = smul.addr %s1964, 64
          %s1966 = scalar_lea.vmem [#allocation9], %s1965
          %1967 = dma.done %s1963, 1024
        $region64: #{tpu_custom_call.1} parent=59 // pred_fallthru
          _
      $region60: #{tpu_custom_call.1} parent=5 // pred_fallthru
        _
    $region6: #{tpu_custom_call.1} parent=1 // loop_footer
      %s22 = sadd.s32 1, %s18
    $region7: #{tpu_custom_call.1} parent=1 // loop_footer_branch
      %17 = sbr.rel target = $region3
    $region8: #{tpu_custom_call.1} parent=1 // loop_exit
      _
    %1968 = vsyncpa [#allocation4], 1
    %s1969 = scalar_lea.sflag [#allocation4], 1
    %1970 = vsyncpa %s1969, 1
    %1971 = vsyncpa [#allocation7], 1
    %1972 = vsyncpa [#allocation5], 1
    %s1973 = scalar_lea.sflag [#allocation5], 1
    %1974 = vsyncpa %s1973, 1

</llo_original>
